<compile_context>
chip_gen: v7x
topology: tpu7x:2x2x1
jax: 0.10.0
libtpu: 0.0.40
codegen_flags: <defaults>
</compile_context>

<pallas_src>
import functools

import jax
import jax.numpy as jnp
from jax.experimental import pallas as pl
from jax.experimental.pallas import tpu as pltpu


def _round8(n):
    return (n + 7) // 8 * 8


def _make_kernel(input_dim, offs):
    """Build the fused autoencoder kernel for a given input_dim and slab row offsets."""
    (o_w1, o_w2, o_w34, o_w5, o_w6, o_b1, o_b2, o_b34, o_b5, o_b6) = offs
    D = input_dim
    bf = jnp.bfloat16

    def kernel(x_ref, slab_ref, o_ref):
        # x_ref: (D, T) f32 with batch on the lane axis.
        xt = x_ref[...]

        # Static slices into the packed parameter slab (zero-cost views, tiny loads).
        w1 = slab_ref[o_w1:o_w1 + 64, 0:D].astype(bf)      # (64, D)
        w2 = slab_ref[o_w2:o_w2 + 32, 0:64].astype(bf)     # (32, 64)
        w34 = slab_ref[o_w34:o_w34 + 32, 0:32].astype(bf)  # (32, 32)  fused enc.4+dec.0
        w5 = slab_ref[o_w5:o_w5 + 64, 0:32].astype(bf)     # (64, 32)
        w6 = slab_ref[o_w6:o_w6 + D, 0:64].astype(bf)      # (D, 64)

        b1 = slab_ref[o_b1:o_b1 + 64, 0:1]                 # (64, 1) f32
        b2 = slab_ref[o_b2:o_b2 + 32, 0:1]
        b34 = slab_ref[o_b34:o_b34 + 32, 0:1]
        b5 = slab_ref[o_b5:o_b5 + 64, 0:1]
        b6 = slab_ref[o_b6:o_b6 + D, 0:1]

        # Encoder.
        h = jnp.dot(w1, xt.astype(bf), preferred_element_type=jnp.float32) + b1
        h = jnp.maximum(h, 0.0)
        h = jnp.dot(w2, h.astype(bf), preferred_element_type=jnp.float32) + b2
        h = jnp.maximum(h, 0.0)
        # Fused encoder.4 + decoder.0 (no ReLU between them in the original module).
        h = jnp.dot(w34, h.astype(bf), preferred_element_type=jnp.float32) + b34
        h = jnp.maximum(h, 0.0)
        # Decoder.
        h = jnp.dot(w5, h.astype(bf), preferred_element_type=jnp.float32) + b5
        h = jnp.maximum(h, 0.0)
        h = jnp.dot(w6, h.astype(bf), preferred_element_type=jnp.float32) + b6

        o_ref[...] = h.astype(o_ref.dtype)

    return kernel


def _pack_param_slab(params, input_dim):
    """Fuse w3/w4 and pack all weights/biases into one (R, 128) f32 slab.

    Weights are PyTorch layout (out, in); biases (out,).  Each block starts at a
    sublane-aligned (multiple of 8) row offset, lane offset 0.
    """
    w34 = params["w4"] @ params["w3"]                          # (32, 32)
    b34 = params["w4"] @ params["b3"] + params["b4"]           # (32,)

    blocks = [
        params["w1"],                 # (64, D)
        params["w2"],                 # (32, 64)
        w34,                          # (32, 32)
        params["w5"],                 # (64, 32)
        params["w6"],                 # (D, 64)
        params["b1"].reshape(-1, 1),  # (64, 1)
        params["b2"].reshape(-1, 1),
        b34.reshape(-1, 1),
        params["b5"].reshape(-1, 1),
        params["b6"].reshape(-1, 1),
    ]

    padded = []
    offsets = []
    cur = 0
    for arr in blocks:
        r, c = arr.shape
        r_pad = _round8(r)
        block = jnp.zeros((r_pad, 128), jnp.float32).at[:r, :c].set(
            arr.astype(jnp.float32))
        padded.append(block)
        offsets.append(cur)
        cur += r_pad
    slab = jnp.concatenate(padded, axis=0)
    return slab, tuple(offsets)


def anomaly_detector_forward(x, params, *, batch_tile=1024):
    """x: [B, input_dim] float32.  params: PyTorch-layout weights (out,in), biases (out,)."""
    B, D = x.shape
    if not (1 <= D <= 128):
        raise ValueError("packed-slab layout assumes input_dim <= 128")
    if batch_tile % 128 != 0 or batch_tile <= 0:
        raise ValueError("batch_tile must be a positive multiple of 128 "
                         "(batch sits on the lane axis)")

    tile = batch_tile
    Bp = ((B + tile - 1) // tile) * tile      # pad batch to a multiple of the tile
    grid = Bp // tile

    slab, offs = _pack_param_slab(params, D)
    kernel = _make_kernel(D, offs)

    # Transposed, lane-dense layout: features on sublanes, batch on lanes.
    xt = jnp.transpose(x).astype(jnp.float32)      # (D, B)
    if Bp != B:
        xt = jnp.pad(xt, ((0, 0), (0, Bp - B)))

    out_t = pl.pallas_call(
        kernel,
        out_shape=jax.ShapeDtypeStruct((D, Bp), x.dtype),
        grid_spec=pltpu.PrefetchScalarGridSpec(
            num_scalar_prefetch=0,
            grid=(grid,),
            in_specs=[
                pl.BlockSpec((D, tile), lambda i: (0, i)),      # x tile, batch on lanes
                pl.BlockSpec(slab.shape, lambda i: (0, 0)),     # replicated param slab
            ],
            out_specs=pl.BlockSpec((D, tile), lambda i: (0, i)),
        ),
        compiler_params=pltpu.CompilerParams(
            dimension_semantics=("parallel",),   # batch axis shards across TCs on v7x
        ),
    )(xt, slab)

    return jnp.transpose(out_t)[:B]


def init_params(input_dim, key):
    """PyTorch nn.Linear-style init: U(-1/sqrt(fan_in), 1/sqrt(fan_in)), (out,in) layout."""
    sizes = [
        (input_dim, 64),  # encoder.0
        (64, 32),         # encoder.2
        (32, 16),         # encoder.4
        (16, 32),         # decoder.0
        (32, 64),         # decoder.2
        (64, input_dim),  # decoder.4
    ]
    params = {}
    for idx, (fan_in, fan_out) in enumerate(sizes, start=1):
        key, kw, kb = jax.random.split(key, 3)
        bound = 1.0 / jnp.sqrt(jnp.float32(fan_in))
        params[f"w{idx}"] = jax.random.uniform(
            kw, (fan_out, fan_in), jnp.float32, minval=-bound, maxval=bound)
        params[f"b{idx}"] = jax.random.uniform(
            kb, (fan_out,), jnp.float32, minval=-bound, maxval=bound)
    return params


def reference_forward(x, params):
    """Pure-JAX reference mirroring the PyTorch module exactly (unfused, f32)."""
    h = x
    h = jnp.maximum(h @ params["w1"].T + params["b1"], 0.0)
    h = jnp.maximum(h @ params["w2"].T + params["b2"], 0.0)
    h = h @ params["w3"].T + params["b3"]
    h = h @ params["w4"].T + params["b4"]
    h = jnp.maximum(h, 0.0)
    h = jnp.maximum(h @ params["w5"].T + params["b5"], 0.0)
    h = h @ params["w6"].T + params["b6"]
    return h


if __name__ == "__main__":
    key = jax.random.PRNGKey(0)
    input_dim = 32
    batch = 8

    key, kx, kp = jax.random.split(key, 3)
    x = jax.random.normal(kx, (batch, input_dim), jnp.float32)
    params = init_params(input_dim, kp)

    out = anomaly_detector_forward(x, params)
    out = jax.block_until_ready(out)

    ref = reference_forward(x, params)
    assert out.shape == (batch, input_dim)
    max_err = float(jnp.max(jnp.abs(out - ref)))
    # bf16 matmuls (f32 accumulation) + host-side w3@w4 fusion -> fp-rounding-level diffs.
    assert jnp.allclose(out, ref, atol=5e-2, rtol=5e-2), (
        f"mismatch vs reference, max abs err = {max_err}")

    print("KERNEL_OK")
</pallas_src>

<mosaic_0001>
module attributes {stable_mosaic.version = 11 : i64} {
  func.func @kernel(%arg0: i32, %arg1: memref<32x1024xf32, #tpu.memory_space<vmem>>, %arg2: memref<448x128xf32, #tpu.memory_space<vmem>>, %arg3: memref<32x1024xf32, #tpu.memory_space<vmem>>) attributes {dimension_semantics = [#tpu.dimension_semantics<parallel>], iteration_bounds = array<i64: 1>, scalar_prefetch = 0 : i64, scratch_operands = 0 : i64, tpu.core_type = #tpu.core_type<tc>, window_params = [{transform_indices = @transform_0, window_bounds = array<i64: 32, 1024>}, {pipeline_mode = #tpu.pipeline_mode<synchronous>, transform_indices = @transform_1, window_bounds = array<i64: 448, 128>}, {transform_indices = @transform_2, window_bounds = array<i64: 32, 1024>}]} {
    %c0 = arith.constant 0 : index
    %c0_0 = arith.constant 0 : index
    %0 = vector.load %arg1[%c0, %c0_0] : memref<32x1024xf32, #tpu.memory_space<vmem>>, vector<32x1024xf32>
    %c0_1 = arith.constant 0 : index
    %c0_2 = arith.constant 0 : index
    %1 = vector.load %arg2[%c0_1, %c0_2] : memref<448x128xf32, #tpu.memory_space<vmem>>, vector<64x32xf32>
    %2 = arith.truncf %1 : vector<64x32xf32> to vector<64x32xbf16>
    %c64 = arith.constant 64 : index
    %c0_3 = arith.constant 0 : index
    %3 = vector.load %arg2[%c64, %c0_3] : memref<448x128xf32, #tpu.memory_space<vmem>>, vector<32x64xf32>
    %4 = arith.truncf %3 : vector<32x64xf32> to vector<32x64xbf16>
    %c96 = arith.constant 96 : index
    %c0_4 = arith.constant 0 : index
    %5 = vector.load %arg2[%c96, %c0_4] : memref<448x128xf32, #tpu.memory_space<vmem>>, vector<32x32xf32>
    %6 = arith.truncf %5 : vector<32x32xf32> to vector<32x32xbf16>
    %c128 = arith.constant 128 : index
    %c0_5 = arith.constant 0 : index
    %7 = vector.load %arg2[%c128, %c0_5] : memref<448x128xf32, #tpu.memory_space<vmem>>, vector<64x32xf32>
    %8 = arith.truncf %7 : vector<64x32xf32> to vector<64x32xbf16>
    %c192 = arith.constant 192 : index
    %c0_6 = arith.constant 0 : index
    %9 = vector.load %arg2[%c192, %c0_6] : memref<448x128xf32, #tpu.memory_space<vmem>>, vector<32x64xf32>
    %10 = arith.truncf %9 : vector<32x64xf32> to vector<32x64xbf16>
    %c224 = arith.constant 224 : index
    %c0_7 = arith.constant 0 : index
    %11 = vector.load %arg2[%c224, %c0_7] : memref<448x128xf32, #tpu.memory_space<vmem>>, vector<64x1xf32>
    %c288 = arith.constant 288 : index
    %c0_8 = arith.constant 0 : index
    %12 = vector.load %arg2[%c288, %c0_8] : memref<448x128xf32, #tpu.memory_space<vmem>>, vector<32x1xf32>
    %c320 = arith.constant 320 : index
    %c0_9 = arith.constant 0 : index
    %13 = vector.load %arg2[%c320, %c0_9] : memref<448x128xf32, #tpu.memory_space<vmem>>, vector<32x1xf32>
    %c352 = arith.constant 352 : index
    %c0_10 = arith.constant 0 : index
    %14 = vector.load %arg2[%c352, %c0_10] : memref<448x128xf32, #tpu.memory_space<vmem>>, vector<64x1xf32>
    %c416 = arith.constant 416 : index
    %c0_11 = arith.constant 0 : index
    %15 = vector.load %arg2[%c416, %c0_11] : memref<448x128xf32, #tpu.memory_space<vmem>>, vector<32x1xf32>
    %16 = arith.truncf %0 : vector<32x1024xf32> to vector<32x1024xbf16>
    %cst = arith.constant dense<0.000000e+00> : vector<64x1024xf32>
    %17 = tpu.matmul %2, %16, %cst {dimension_numbers = #tpu.dot_dimension_numbers<[1], [0], [0], [1], [0, 0, 1, 1], [], []>} : vector<64x32xbf16>, vector<32x1024xbf16>, vector<64x1024xf32> -> vector<64x1024xf32>
    %18 = vector.broadcast %11 : vector<64x1xf32> to vector<64x1024xf32>
    %19 = arith.addf %17, %18 : vector<64x1024xf32>
    %cst_12 = arith.constant 0.000000e+00 : f32
    %20 = vector.broadcast %cst_12 : f32 to vector<64x1024xf32>
    %21 = arith.maximumf %19, %20 : vector<64x1024xf32>
    %22 = arith.truncf %21 : vector<64x1024xf32> to vector<64x1024xbf16>
    %cst_13 = arith.constant dense<0.000000e+00> : vector<32x1024xf32>
    %23 = tpu.matmul %4, %22, %cst_13 {dimension_numbers = #tpu.dot_dimension_numbers<[1], [0], [0], [1], [0, 0, 1, 1], [], []>} : vector<32x64xbf16>, vector<64x1024xbf16>, vector<32x1024xf32> -> vector<32x1024xf32>
    %24 = vector.broadcast %12 : vector<32x1xf32> to vector<32x1024xf32>
    %25 = arith.addf %23, %24 : vector<32x1024xf32>
    %cst_14 = arith.constant 0.000000e+00 : f32
    %26 = vector.broadcast %cst_14 : f32 to vector<32x1024xf32>
    %27 = arith.maximumf %25, %26 : vector<32x1024xf32>
    %28 = arith.truncf %27 : vector<32x1024xf32> to vector<32x1024xbf16>
    %cst_15 = arith.constant dense<0.000000e+00> : vector<32x1024xf32>
    %29 = tpu.matmul %6, %28, %cst_15 {dimension_numbers = #tpu.dot_dimension_numbers<[1], [0], [0], [1], [0, 0, 1, 1], [], []>} : vector<32x32xbf16>, vector<32x1024xbf16>, vector<32x1024xf32> -> vector<32x1024xf32>
    %30 = vector.broadcast %13 : vector<32x1xf32> to vector<32x1024xf32>
    %31 = arith.addf %29, %30 : vector<32x1024xf32>
    %cst_16 = arith.constant 0.000000e+00 : f32
    %32 = vector.broadcast %cst_16 : f32 to vector<32x1024xf32>
    %33 = arith.maximumf %31, %32 : vector<32x1024xf32>
    %34 = arith.truncf %33 : vector<32x1024xf32> to vector<32x1024xbf16>
    %cst_17 = arith.constant dense<0.000000e+00> : vector<64x1024xf32>
    %35 = tpu.matmul %8, %34, %cst_17 {dimension_numbers = #tpu.dot_dimension_numbers<[1], [0], [0], [1], [0, 0, 1, 1], [], []>} : vector<64x32xbf16>, vector<32x1024xbf16>, vector<64x1024xf32> -> vector<64x1024xf32>
    %36 = vector.broadcast %14 : vector<64x1xf32> to vector<64x1024xf32>
    %37 = arith.addf %35, %36 : vector<64x1024xf32>
    %cst_18 = arith.constant 0.000000e+00 : f32
    %38 = vector.broadcast %cst_18 : f32 to vector<64x1024xf32>
    %39 = arith.maximumf %37, %38 : vector<64x1024xf32>
    %40 = arith.truncf %39 : vector<64x1024xf32> to vector<64x1024xbf16>
    %cst_19 = arith.constant dense<0.000000e+00> : vector<32x1024xf32>
    %41 = tpu.matmul %10, %40, %cst_19 {dimension_numbers = #tpu.dot_dimension_numbers<[1], [0], [0], [1], [0, 0, 1, 1], [], []>} : vector<32x64xbf16>, vector<64x1024xbf16>, vector<32x1024xf32> -> vector<32x1024xf32>
    %42 = vector.broadcast %15 : vector<32x1xf32> to vector<32x1024xf32>
    %43 = arith.addf %41, %42 : vector<32x1024xf32>
    %c0_20 = arith.constant 0 : index
    %c0_21 = arith.constant 0 : index
    %44 = vector.load %arg3[%c0_20, %c0_21] : memref<32x1024xf32, #tpu.memory_space<vmem>>, vector<32x1024xf32>
    tpu.vector_store %arg3[%c0_20, %c0_21], %43 {strides = array<i32>} : memref<32x1024xf32, #tpu.memory_space<vmem>>, vector<32x1024xf32>,
    return
  }
  func.func @transform_0(%arg0: i32) -> (i32, i32) {
    %c0_i32 = arith.constant 0 : i32
    %c0_i32_0 = arith.constant 0 : i32
    return %c0_i32, %arg0 : i32, i32
  }
  func.func @transform_1(%arg0: i32) -> (i32, i32) {
    %c0_i32 = arith.constant 0 : i32
    %c0_i32_0 = arith.constant 0 : i32
    %c0_i32_1 = arith.constant 0 : i32
    return %c0_i32, %c0_i32_0 : i32, i32
  }
  func.func @transform_2(%arg0: i32) -> (i32, i32) {
    %c0_i32 = arith.constant 0 : i32
    %c0_i32_0 = arith.constant 0 : i32
    return %c0_i32, %arg0 : i32, i32
  }
}

</mosaic_0001>

<llo_original>
// kernel: tpu_custom_call.1
$region0: #{tpu_custom_call.1}
  #allocation0 [shape = 'u32[]', space=smem, size = 0x4, offset = 0x4, fixed_abs, tag = 'smem constant byte address 0x4 - core index']
  #allocation1 [shape = 'u32[144,128]{1,0:T(1,128)}', space=vmem, size = 0x12000, scoped, tag = 'internal scratch']
  %s0 = inlined_call_operand.hbm [shape: f32[32,1024], index: 0, kind: input, shape index: {}]
  %s1 = inlined_call_operand.hbm [shape: f32[448,128], index: 1, kind: input, shape index: {}]
  %s2 = inlined_call_operand.hbm [shape: f32[32,1024], index: 2, kind: output, shape index: {}]
  %s3 = sld [smem:[#allocation0]]
  $region26: #{tpu_custom_call.1} parent=0
    _
  %s5 = ssub.s32 1, %s3
  %s6 = scalar_select 0, %s5, %s3
  $region1: #{tpu_custom_call.1} parent=0
    #allocation2 [shape = 'u8[131072]{0}', space=vmem, size = 0x20000, scoped, tag = 'input window, operand 0, single buffered']
    #allocation3 [shape = 's32[1]{0}', space=sflag, size = 0x4, scoped, tag = 'scoped memory for tpu_custom_call.1']
    #allocation4 [shape = 's32[1]{0}', space=sflag, size = 0x4, scoped, tag = 'scoped memory for tpu_custom_call.1']
    #allocation5 [shape = 'u8[229376]{0}', space=vmem, size = 0x38000, scoped, tag = 'input window, operand 1, single buffered']
    #allocation6 [shape = 's32[1]{0}', space=sflag, size = 0x4, scoped, tag = 'scoped memory for tpu_custom_call.1']
    #allocation7 [shape = 'u8[131072]{0}', space=vmem, size = 0x20000, scoped, tag = 'output window, operand 0, single buffered']
    %7 = vsyncpa [#allocation3], 0
    %8 = vsyncpa [#allocation6], 0
    %9 = vsyncpa [#allocation4], 0
    // Predicated region
    $region2: #{tpu_custom_call.1} parent=1 // pred_check
      _
    $region3: #{tpu_custom_call.1} parent=1 // pred_check_branch
      %11 = sbr.rel (0) target = $region5
    $region4: #{tpu_custom_call.1} parent=1 // pred_region
      %s13 = ssub.s32 4096, 4096
      %14 = vsyncadd [#allocation3], %s13
      %s15 = sshll.u32 [#allocation2], 4
      %s16 = int_to_ptr.vmem [resolvable:$true] %s15
      %21 = dma.hbm_to_vmem [thread:$0]  %s0, 4096, %s16, [#allocation3], 1024, 1024, 64
    $region5: #{tpu_custom_call.1} parent=1 // pred_fallthru
      _
    // Predicated region
    $region6: #{tpu_custom_call.1} parent=1 // pred_check
      _
    $region7: #{tpu_custom_call.1} parent=1 // pred_check_branch
      %23 = sbr.rel (0) target = $region9
    $region8: #{tpu_custom_call.1} parent=1 // pred_region
      %s25 = ssub.s32 7168, 7168
      %26 = vsyncadd [#allocation6], %s25
      %s27 = sshll.u32 [#allocation5], 4
      %s28 = int_to_ptr.vmem [resolvable:$true] %s27
      %33 = dma.hbm_to_vmem [thread:$0]  %s1, 7168, %s28, [#allocation6], 128, 128, 8
    $region9: #{tpu_custom_call.1} parent=1 // pred_fallthru
      _
    // Predicated region
    $region10: #{tpu_custom_call.1} parent=1 // pred_check
      _
    $region11: #{tpu_custom_call.1} parent=1 // pred_check_branch
      %35 = sbr.rel (0) target = $region13
    $region12: #{tpu_custom_call.1} parent=1 // pred_region
      %36 = dma.done [#allocation3], 4096
    $region13: #{tpu_custom_call.1} parent=1 // pred_fallthru
      _
    // Predicated region
    $region14: #{tpu_custom_call.1} parent=1 // pred_check
      _
    $region15: #{tpu_custom_call.1} parent=1 // pred_check_branch
      %38 = sbr.rel (0) target = $region17
    $region16: #{tpu_custom_call.1} parent=1 // pred_region
      %39 = dma.done [#allocation6], 7168
    $region17: #{tpu_custom_call.1} parent=1 // pred_fallthru
      _
    %v41 = vld [vmem:[#allocation2] sm:$0xff]
    %v42 = vld [vmem:[#allocation2 + $0x8] sm:$0xff]
    %v43 = vld [vmem:[#allocation2 + $0x10] sm:$0xff]
    %v44 = vld [vmem:[#allocation2 + $0x18] sm:$0xff]
    %v45 = vld [vmem:[#allocation2 + $0x20] sm:$0xff]
    %v46 = vld [vmem:[#allocation2 + $0x28] sm:$0xff]
    %v47 = vld [vmem:[#allocation2 + $0x30] sm:$0xff]
    %v48 = vld [vmem:[#allocation2 + $0x38] sm:$0xff]
    %v49 = vld [vmem:[#allocation2 + $0x40] sm:$0xff]
    %v50 = vld [vmem:[#allocation2 + $0x48] sm:$0xff]
    %v51 = vld [vmem:[#allocation2 + $0x50] sm:$0xff]
    %v52 = vld [vmem:[#allocation2 + $0x58] sm:$0xff]
    %v53 = vld [vmem:[#allocation2 + $0x60] sm:$0xff]
    %v54 = vld [vmem:[#allocation2 + $0x68] sm:$0xff]
    %v55 = vld [vmem:[#allocation2 + $0x70] sm:$0xff]
    %v56 = vld [vmem:[#allocation2 + $0x78] sm:$0xff]
    %v57 = vld [vmem:[#allocation2 + $0x80] sm:$0xff]
    %v58 = vld [vmem:[#allocation2 + $0x88] sm:$0xff]
    %v59 = vld [vmem:[#allocation2 + $0x90] sm:$0xff]
    %v60 = vld [vmem:[#allocation2 + $0x98] sm:$0xff]
    %v61 = vld [vmem:[#allocation2 + $0xa0] sm:$0xff]
    %v62 = vld [vmem:[#allocation2 + $0xa8] sm:$0xff]
    %v63 = vld [vmem:[#allocation2 + $0xb0] sm:$0xff]
    %v64 = vld [vmem:[#allocation2 + $0xb8] sm:$0xff]
    %v65 = vld [vmem:[#allocation2 + $0xc0] sm:$0xff]
    %v66 = vld [vmem:[#allocation2 + $0xc8] sm:$0xff]
    %v67 = vld [vmem:[#allocation2 + $0xd0] sm:$0xff]
    %v68 = vld [vmem:[#allocation2 + $0xd8] sm:$0xff]
    %v69 = vld [vmem:[#allocation2 + $0xe0] sm:$0xff]
    %v70 = vld [vmem:[#allocation2 + $0xe8] sm:$0xff]
    %v71 = vld [vmem:[#allocation2 + $0xf0] sm:$0xff]
    %v72 = vld [vmem:[#allocation2 + $0xf8] sm:$0xff]
    %v73 = vld [vmem:[#allocation5] sm:$0xff]
    %v74 = vld [vmem:[#allocation5 + $0x8] sm:$0xff]
    %v75 = vld [vmem:[#allocation5 + $0x10] sm:$0xff]
    %v76 = vld [vmem:[#allocation5 + $0x18] sm:$0xff]
    %v77 = vld [vmem:[#allocation5 + $0x20] sm:$0xff]
    %v78 = vld [vmem:[#allocation5 + $0x28] sm:$0xff]
    %v79 = vld [vmem:[#allocation5 + $0x30] sm:$0xff]
    %v80 = vld [vmem:[#allocation5 + $0x38] sm:$0xff]
    %v81 = vpack.c.bf16 %v74, %v73
    %v82 = vpack.c.bf16 %v76, %v75
    %v83 = vpack.c.bf16 %v78, %v77
    %v84 = vpack.c.bf16 %v80, %v79
    %v85 = vld [vmem:[#allocation5 + $0x40] sm:$0xff]
    %v86 = vld [vmem:[#allocation5 + $0x48] sm:$0xff]
    %v87 = vld [vmem:[#allocation5 + $0x50] sm:$0xff]
    %v88 = vld [vmem:[#allocation5 + $0x58] sm:$0xff]
    %v89 = vpack.c.bf16 %v86, %v85
    %v90 = vpack.c.bf16 %v88, %v87
    %v91 = vld [vmem:[#allocation5 + $0x60] sm:$0xff]
    %v92 = vld [vmem:[#allocation5 + $0x68] sm:$0xff]
    %v93 = vld [vmem:[#allocation5 + $0x70] sm:$0xff]
    %v94 = vld [vmem:[#allocation5 + $0x78] sm:$0xff]
    %v95 = vpack.c.bf16 %v92, %v91
    %v96 = vpack.c.bf16 %v94, %v93
    %v97 = vld [vmem:[#allocation5 + $0x80] sm:$0xff]
    %v98 = vld [vmem:[#allocation5 + $0x88] sm:$0xff]
    %v99 = vld [vmem:[#allocation5 + $0x90] sm:$0xff]
    %v100 = vld [vmem:[#allocation5 + $0x98] sm:$0xff]
    %v101 = vld [vmem:[#allocation5 + $0xa0] sm:$0xff]
    %v102 = vld [vmem:[#allocation5 + $0xa8] sm:$0xff]
    %v103 = vld [vmem:[#allocation5 + $0xb0] sm:$0xff]
    %v104 = vld [vmem:[#allocation5 + $0xb8] sm:$0xff]
    %v105 = vpack.c.bf16 %v98, %v97
    %v106 = vpack.c.bf16 %v100, %v99
    %v107 = vpack.c.bf16 %v102, %v101
    %v108 = vpack.c.bf16 %v104, %v103
    %v109 = vld [vmem:[#allocation5 + $0xc0] sm:$0xff]
    %v110 = vld [vmem:[#allocation5 + $0xc8] sm:$0xff]
    %v111 = vld [vmem:[#allocation5 + $0xd0] sm:$0xff]
    %v112 = vld [vmem:[#allocation5 + $0xd8] sm:$0xff]
    %v113 = vpack.c.bf16 %v110, %v109
    %v114 = vpack.c.bf16 %v112, %v111
    %v115 = vld [vmem:[#allocation5 + $0xe0] sm:$0xff]
    %v116 = vld [vmem:[#allocation5 + $0xe8] sm:$0xff]
    %v117 = vld [vmem:[#allocation5 + $0xf0] sm:$0xff]
    %v118 = vld [vmem:[#allocation5 + $0xf8] sm:$0xff]
    %v119 = vld [vmem:[#allocation5 + $0x100] sm:$0xff]
    %v120 = vld [vmem:[#allocation5 + $0x108] sm:$0xff]
    %v121 = vld [vmem:[#allocation5 + $0x110] sm:$0xff]
    %v122 = vld [vmem:[#allocation5 + $0x118] sm:$0xff]
    %v123 = vld [vmem:[#allocation5 + $0x120] sm:$0xff]
    %v124 = vld [vmem:[#allocation5 + $0x128] sm:$0xff]
    %v125 = vld [vmem:[#allocation5 + $0x130] sm:$0xff]
    %v126 = vld [vmem:[#allocation5 + $0x138] sm:$0xff]
    %v127 = vld [vmem:[#allocation5 + $0x140] sm:$0xff]
    %v128 = vld [vmem:[#allocation5 + $0x148] sm:$0xff]
    %v129 = vld [vmem:[#allocation5 + $0x150] sm:$0xff]
    %v130 = vld [vmem:[#allocation5 + $0x158] sm:$0xff]
    %v131 = vld [vmem:[#allocation5 + $0x160] sm:$0xff]
    %v132 = vld [vmem:[#allocation5 + $0x168] sm:$0xff]
    %v133 = vld [vmem:[#allocation5 + $0x170] sm:$0xff]
    %v134 = vld [vmem:[#allocation5 + $0x178] sm:$0xff]
    %v135 = vld [vmem:[#allocation5 + $0x180] sm:$0xff]
    %v136 = vld [vmem:[#allocation5 + $0x188] sm:$0xff]
    %v137 = vld [vmem:[#allocation5 + $0x190] sm:$0xff]
    %v138 = vld [vmem:[#allocation5 + $0x198] sm:$0xff]
    %v139 = vld [vmem:[#allocation5 + $0x1a0] sm:$0xff]
    %v140 = vld [vmem:[#allocation5 + $0x1a8] sm:$0xff]
    %v141 = vld [vmem:[#allocation5 + $0x1b0] sm:$0xff]
    %v142 = vld [vmem:[#allocation5 + $0x1b8] sm:$0xff]
    %v143 = vpack.c.bf16 %v49, %v41
    %v144 = vpack.c.bf16 %v50, %v42
    %v145 = vpack.c.bf16 %v51, %v43
    %v146 = vpack.c.bf16 %v52, %v44
    %v147 = vpack.c.bf16 %v53, %v45
    %v148 = vpack.c.bf16 %v54, %v46
    %v149 = vpack.c.bf16 %v55, %v47
    %v150 = vpack.c.bf16 %v56, %v48
    %v151 = vpack.c.bf16 %v65, %v57
    %v152 = vpack.c.bf16 %v66, %v58
    %v153 = vpack.c.bf16 %v67, %v59
    %v154 = vpack.c.bf16 %v68, %v60
    %v155 = vpack.c.bf16 %v69, %v61
    %v156 = vpack.c.bf16 %v70, %v62
    %v157 = vpack.c.bf16 %v71, %v63
    %v158 = vpack.c.bf16 %v72, %v64
    %160 = vset.pattern.permute.xlu0 0
    %161 = vperm.xlu0 %160, %v115
    %v162 = vpop.permute.xlu0 %161
    %165 = vset.pattern.permute.xlu0 0
    %166 = vperm.xlu0 %165, %v116
    %v167 = vpop.permute.xlu0 %166
    %170 = vset.pattern.permute.xlu0 0
    %171 = vperm.xlu0 %170, %v117
    %v172 = vpop.permute.xlu0 %171
    %175 = vset.pattern.permute.xlu0 0
    %176 = vperm.xlu0 %175, %v118
    %v177 = vpop.permute.xlu0 %176
    %180 = vset.pattern.permute.xlu0 0
    %181 = vperm.xlu0 %180, %v119
    %v182 = vpop.permute.xlu0 %181
    %185 = vset.pattern.permute.xlu0 0
    %186 = vperm.xlu0 %185, %v120
    %v187 = vpop.permute.xlu0 %186
    %190 = vset.pattern.permute.xlu0 0
    %191 = vperm.xlu0 %190, %v121
    %v192 = vpop.permute.xlu0 %191
    %195 = vset.pattern.permute.xlu0 0
    %196 = vperm.xlu0 %195, %v122
    %v197 = vpop.permute.xlu0 %196
    %vm199 = vcmask 261120
    %v201 = vsel %vm199, %v81, 0
    %v204 = vsel %vm199, %v82, 0
    %v207 = vsel %vm199, %v83, 0
    %v210 = vsel %vm199, %v84, 0
    %212 = vmatprep.subr.bf16.mxu0 %v144
    %213 = vmatpush1.bf16.msra.mxu0 %v143
    %214 = vmatprep.subr.bf16.mxu0 %v152
    %215 = vmatpush1.bf16.msra.mxu0 %v151
    %216 = vmatprep.subr.bf16.mxu0 0
    %217 = vmatpush1.bf16.msra.mxu0 0
    %218 = vmatprep.subr.bf16.mxu0 0
    %219 = vmatpush1.bf16.msra.mxu0 0
    %220 = vmatprep.subr.bf16.mxu0 0
    %221 = vmatpush1.bf16.msra.mxu0 0
    %222 = vmatprep.subr.bf16.mxu0 0
    %223 = vmatpush1.bf16.msra.mxu0 0
    %224 = vmatprep.subr.bf16.mxu0 0
    %225 = vmatpush1.bf16.msra.mxu0 0
    %226 = vmatprep.subr.bf16.mxu0 0
    %227 = vmatpush1.bf16.msra.mxu0 0
    %228 = vmatprep.subr.bf16.mxu0 0
    %229 = vmatpush1.bf16.msra.mxu0 0
    %230 = vmatprep.subr.bf16.mxu0 0
    %231 = vmatpush1.bf16.msra.mxu0 0
    %232 = vmatprep.subr.bf16.mxu0 0
    %233 = vmatpush1.bf16.msra.mxu0 0
    %234 = vmatprep.subr.bf16.mxu0 0
    %235 = vmatpush1.bf16.msra.mxu0 0
    %236 = vmatprep.subr.bf16.mxu0 0
    %237 = vmatpush1.bf16.msra.mxu0 0
    %238 = vmatprep.subr.bf16.mxu0 0
    %239 = vmatpush1.bf16.msra.mxu0 0
    %240 = vmatprep.subr.bf16.mxu0 0
    %241 = vmatpush1.bf16.msra.mxu0 0
    %242 = vmatprep.subr.bf16.mxu0 0
    %243 = vmatpush1.bf16.msra.mxu0 0
    %244 = vmatprep.mubr.bf16.mxu0 0
    %245 = vmatmul.mubr.bf16.gmra.mrb[0].mxu0 %v201
    %v246 = vpop.f32.mrb[0].mxu0
    %v247 = vadd.f32 %v162, %v246
    %v248 = vpop.f32.mrb[0].mxu0
    %v249 = vadd.f32 %v162, %v248
    %v250 = vpop.f32.mrb[0].mxu0
    %v251 = vadd.f32 %v167, %v250
    %v252 = vpop.f32.mrb[0].mxu0
    %v253 = vadd.f32 %v167, %v252
    %254 = vmatprep.mubr.bf16.mxu0 0
    %255 = vmatmul.mubr.bf16.gmra.mrb[0].mxu0 %v204
    %v256 = vpop.f32.mrb[0].mxu0
    %v257 = vadd.f32 %v172, %v256
    %v258 = vpop.f32.mrb[0].mxu0
    %v259 = vadd.f32 %v172, %v258
    %v260 = vpop.f32.mrb[0].mxu0
    %v261 = vadd.f32 %v177, %v260
    %v262 = vpop.f32.mrb[0].mxu0
    %v263 = vadd.f32 %v177, %v262
    %264 = vmatprep.mubr.bf16.mxu0 0
    %265 = vmatmul.mubr.bf16.gmra.mrb[0].mxu0 %v207
    %v266 = vpop.f32.mrb[0].mxu0
    %v267 = vadd.f32 %v182, %v266
    %v268 = vpop.f32.mrb[0].mxu0
    %v269 = vadd.f32 %v182, %v268
    %v270 = vpop.f32.mrb[0].mxu0
    %v271 = vadd.f32 %v187, %v270
    %v272 = vpop.f32.mrb[0].mxu0
    %v273 = vadd.f32 %v187, %v272
    %274 = vmatprep.mubr.bf16.mxu0 0
    %275 = vmatmul.mubr.bf16.gmra.mrb[0].mxu0 %v210
    %v276 = vpop.f32.mrb[0].mxu0
    %v277 = vadd.f32 %v192, %v276
    %v278 = vpop.f32.mrb[0].mxu0
    %v279 = vadd.f32 %v192, %v278
    %v280 = vpop.f32.mrb[0].mxu0
    %v281 = vadd.f32 %v197, %v280
    %v282 = vpop.f32.mrb[0].mxu0
    %v283 = vadd.f32 %v197, %v282
    %284 = vdwg.mxu0
    %285 = vmatprep.subr.bf16.mxu0 %v146
    %286 = vmatpush1.bf16.msra.mxu0 %v145
    %287 = vmatprep.subr.bf16.mxu0 %v154
    %288 = vmatpush1.bf16.msra.mxu0 %v153
    %289 = vmatprep.subr.bf16.mxu0 0
    %290 = vmatpush1.bf16.msra.mxu0 0
    %291 = vmatprep.subr.bf16.mxu0 0
    %292 = vmatpush1.bf16.msra.mxu0 0
    %293 = vmatprep.subr.bf16.mxu0 0
    %294 = vmatpush1.bf16.msra.mxu0 0
    %295 = vmatprep.subr.bf16.mxu0 0
    %296 = vmatpush1.bf16.msra.mxu0 0
    %297 = vmatprep.subr.bf16.mxu0 0
    %298 = vmatpush1.bf16.msra.mxu0 0
    %299 = vmatprep.subr.bf16.mxu0 0
    %300 = vmatpush1.bf16.msra.mxu0 0
    %301 = vmatprep.subr.bf16.mxu0 0
    %302 = vmatpush1.bf16.msra.mxu0 0
    %303 = vmatprep.subr.bf16.mxu0 0
    %304 = vmatpush1.bf16.msra.mxu0 0
    %305 = vmatprep.subr.bf16.mxu0 0
    %306 = vmatpush1.bf16.msra.mxu0 0
    %307 = vmatprep.subr.bf16.mxu0 0
    %308 = vmatpush1.bf16.msra.mxu0 0
    %309 = vmatprep.subr.bf16.mxu0 0
    %310 = vmatpush1.bf16.msra.mxu0 0
    %311 = vmatprep.subr.bf16.mxu0 0
    %312 = vmatpush1.bf16.msra.mxu0 0
    %313 = vmatprep.subr.bf16.mxu0 0
    %314 = vmatpush1.bf16.msra.mxu0 0
    %315 = vmatprep.subr.bf16.mxu0 0
    %316 = vmatpush1.bf16.msra.mxu0 0
    %317 = vmatprep.mubr.bf16.mxu0 0
    %318 = vmatmul.mubr.bf16.gmra.mrb[0].mxu0 %v201
    %v319 = vpop.f32.mrb[0].mxu0
    %v320 = vadd.f32 %v162, %v319
    %v321 = vpop.f32.mrb[0].mxu0
    %v322 = vadd.f32 %v162, %v321
    %v323 = vpop.f32.mrb[0].mxu0
    %v324 = vadd.f32 %v167, %v323
    %v325 = vpop.f32.mrb[0].mxu0
    %v326 = vadd.f32 %v167, %v325
    %327 = vmatprep.mubr.bf16.mxu0 0
    %328 = vmatmul.mubr.bf16.gmra.mrb[0].mxu0 %v204
    %v329 = vpop.f32.mrb[0].mxu0
    %v330 = vadd.f32 %v172, %v329
    %v331 = vpop.f32.mrb[0].mxu0
    %v332 = vadd.f32 %v172, %v331
    %v333 = vpop.f32.mrb[0].mxu0
    %v334 = vadd.f32 %v177, %v333
    %v335 = vpop.f32.mrb[0].mxu0
    %v336 = vadd.f32 %v177, %v335
    %337 = vmatprep.mubr.bf16.mxu0 0
    %338 = vmatmul.mubr.bf16.gmra.mrb[0].mxu0 %v207
    %v339 = vpop.f32.mrb[0].mxu0
    %v340 = vadd.f32 %v182, %v339
    %v341 = vpop.f32.mrb[0].mxu0
    %v342 = vadd.f32 %v182, %v341
    %v343 = vpop.f32.mrb[0].mxu0
    %v344 = vadd.f32 %v187, %v343
    %v345 = vpop.f32.mrb[0].mxu0
    %v346 = vadd.f32 %v187, %v345
    %347 = vmatprep.mubr.bf16.mxu0 0
    %348 = vmatmul.mubr.bf16.gmra.mrb[0].mxu0 %v210
    %v349 = vpop.f32.mrb[0].mxu0
    %v350 = vadd.f32 %v192, %v349
    %v351 = vpop.f32.mrb[0].mxu0
    %v352 = vadd.f32 %v192, %v351
    %v353 = vpop.f32.mrb[0].mxu0
    %v354 = vadd.f32 %v197, %v353
    %v355 = vpop.f32.mrb[0].mxu0
    %v356 = vadd.f32 %v197, %v355
    %357 = vdwg.mxu0
    %358 = vmatprep.subr.bf16.mxu0 %v148
    %359 = vmatpush1.bf16.msra.mxu0 %v147
    %360 = vmatprep.subr.bf16.mxu0 %v156
    %361 = vmatpush1.bf16.msra.mxu0 %v155
    %362 = vmatprep.subr.bf16.mxu0 0
    %363 = vmatpush1.bf16.msra.mxu0 0
    %364 = vmatprep.subr.bf16.mxu0 0
    %365 = vmatpush1.bf16.msra.mxu0 0
    %366 = vmatprep.subr.bf16.mxu0 0
    %367 = vmatpush1.bf16.msra.mxu0 0
    %368 = vmatprep.subr.bf16.mxu0 0
    %369 = vmatpush1.bf16.msra.mxu0 0
    %370 = vmatprep.subr.bf16.mxu0 0
    %371 = vmatpush1.bf16.msra.mxu0 0
    %372 = vmatprep.subr.bf16.mxu0 0
    %373 = vmatpush1.bf16.msra.mxu0 0
    %374 = vmatprep.subr.bf16.mxu0 0
    %375 = vmatpush1.bf16.msra.mxu0 0
    %376 = vmatprep.subr.bf16.mxu0 0
    %377 = vmatpush1.bf16.msra.mxu0 0
    %378 = vmatprep.subr.bf16.mxu0 0
    %379 = vmatpush1.bf16.msra.mxu0 0
    %380 = vmatprep.subr.bf16.mxu0 0
    %381 = vmatpush1.bf16.msra.mxu0 0
    %382 = vmatprep.subr.bf16.mxu0 0
    %383 = vmatpush1.bf16.msra.mxu0 0
    %384 = vmatprep.subr.bf16.mxu0 0
    %385 = vmatpush1.bf16.msra.mxu0 0
    %386 = vmatprep.subr.bf16.mxu0 0
    %387 = vmatpush1.bf16.msra.mxu0 0
    %388 = vmatprep.subr.bf16.mxu0 0
    %389 = vmatpush1.bf16.msra.mxu0 0
    %390 = vmatprep.mubr.bf16.mxu0 0
    %391 = vmatmul.mubr.bf16.gmra.mrb[0].mxu0 %v201
    %v392 = vpop.f32.mrb[0].mxu0
    %v393 = vadd.f32 %v162, %v392
    %v394 = vpop.f32.mrb[0].mxu0
    %v395 = vadd.f32 %v162, %v394
    %v396 = vpop.f32.mrb[0].mxu0
    %v397 = vadd.f32 %v167, %v396
    %v398 = vpop.f32.mrb[0].mxu0
    %v399 = vadd.f32 %v167, %v398
    %400 = vmatprep.mubr.bf16.mxu0 0
    %401 = vmatmul.mubr.bf16.gmra.mrb[0].mxu0 %v204
    %v402 = vpop.f32.mrb[0].mxu0
    %v403 = vadd.f32 %v172, %v402
    %v404 = vpop.f32.mrb[0].mxu0
    %v405 = vadd.f32 %v172, %v404
    %v406 = vpop.f32.mrb[0].mxu0
    %v407 = vadd.f32 %v177, %v406
    %v408 = vpop.f32.mrb[0].mxu0
    %v409 = vadd.f32 %v177, %v408
    %410 = vmatprep.mubr.bf16.mxu0 0
    %411 = vmatmul.mubr.bf16.gmra.mrb[0].mxu0 %v207
    %v412 = vpop.f32.mrb[0].mxu0
    %v413 = vadd.f32 %v182, %v412
    %v414 = vpop.f32.mrb[0].mxu0
    %v415 = vadd.f32 %v182, %v414
    %v416 = vpop.f32.mrb[0].mxu0
    %v417 = vadd.f32 %v187, %v416
    %v418 = vpop.f32.mrb[0].mxu0
    %v419 = vadd.f32 %v187, %v418
    %420 = vmatprep.mubr.bf16.mxu0 0
    %421 = vmatmul.mubr.bf16.gmra.mrb[0].mxu0 %v210
    %v422 = vpop.f32.mrb[0].mxu0
    %v423 = vadd.f32 %v192, %v422
    %v424 = vpop.f32.mrb[0].mxu0
    %v425 = vadd.f32 %v192, %v424
    %v426 = vpop.f32.mrb[0].mxu0
    %v427 = vadd.f32 %v197, %v426
    %v428 = vpop.f32.mrb[0].mxu0
    %v429 = vadd.f32 %v197, %v428
    %430 = vdwg.mxu0
    %431 = vmatprep.subr.bf16.mxu0 %v150
    %432 = vmatpush1.bf16.msra.mxu0 %v149
    %433 = vmatprep.subr.bf16.mxu0 %v158
    %434 = vmatpush1.bf16.msra.mxu0 %v157
    %435 = vmatprep.subr.bf16.mxu0 0
    %436 = vmatpush1.bf16.msra.mxu0 0
    %437 = vmatprep.subr.bf16.mxu0 0
    %438 = vmatpush1.bf16.msra.mxu0 0
    %439 = vmatprep.subr.bf16.mxu0 0
    %440 = vmatpush1.bf16.msra.mxu0 0
    %441 = vmatprep.subr.bf16.mxu0 0
    %442 = vmatpush1.bf16.msra.mxu0 0
    %443 = vmatprep.subr.bf16.mxu0 0
    %444 = vmatpush1.bf16.msra.mxu0 0
    %445 = vmatprep.subr.bf16.mxu0 0
    %446 = vmatpush1.bf16.msra.mxu0 0
    %447 = vmatprep.subr.bf16.mxu0 0
    %448 = vmatpush1.bf16.msra.mxu0 0
    %449 = vmatprep.subr.bf16.mxu0 0
    %450 = vmatpush1.bf16.msra.mxu0 0
    %451 = vmatprep.subr.bf16.mxu0 0
    %452 = vmatpush1.bf16.msra.mxu0 0
    %453 = vmatprep.subr.bf16.mxu0 0
    %454 = vmatpush1.bf16.msra.mxu0 0
    %455 = vmatprep.subr.bf16.mxu0 0
    %456 = vmatpush1.bf16.msra.mxu0 0
    %457 = vmatprep.subr.bf16.mxu0 0
    %458 = vmatpush1.bf16.msra.mxu0 0
    %459 = vmatprep.subr.bf16.mxu0 0
    %460 = vmatpush1.bf16.msra.mxu0 0
    %461 = vmatprep.subr.bf16.mxu0 0
    %462 = vmatpush1.bf16.msra.mxu0 0
    %463 = vmatprep.mubr.bf16.mxu0 0
    %464 = vmatmul.mubr.bf16.gmra.mrb[0].mxu0 %v201
    %v465 = vpop.f32.mrb[0].mxu0
    %v466 = vadd.f32 %v162, %v465
    %v467 = vpop.f32.mrb[0].mxu0
    %v468 = vadd.f32 %v162, %v467
    %v469 = vpop.f32.mrb[0].mxu0
    %v470 = vadd.f32 %v167, %v469
    %v471 = vpop.f32.mrb[0].mxu0
    %v472 = vadd.f32 %v167, %v471
    %473 = vmatprep.mubr.bf16.mxu0 0
    %474 = vmatmul.mubr.bf16.gmra.mrb[0].mxu0 %v204
    %v475 = vpop.f32.mrb[0].mxu0
    %v476 = vadd.f32 %v172, %v475
    %v477 = vpop.f32.mrb[0].mxu0
    %v478 = vadd.f32 %v172, %v477
    %v479 = vpop.f32.mrb[0].mxu0
    %v480 = vadd.f32 %v177, %v479
    %v481 = vpop.f32.mrb[0].mxu0
    %v482 = vadd.f32 %v177, %v481
    %483 = vmatprep.mubr.bf16.mxu0 0
    %484 = vmatmul.mubr.bf16.gmra.mrb[0].mxu0 %v207
    %v485 = vpop.f32.mrb[0].mxu0
    %v486 = vadd.f32 %v182, %v485
    %v487 = vpop.f32.mrb[0].mxu0
    %v488 = vadd.f32 %v182, %v487
    %v489 = vpop.f32.mrb[0].mxu0
    %v490 = vadd.f32 %v187, %v489
    %v491 = vpop.f32.mrb[0].mxu0
    %v492 = vadd.f32 %v187, %v491
    %493 = vmatprep.mubr.bf16.mxu0 0
    %494 = vmatmul.mubr.bf16.gmra.mrb[0].mxu0 %v210
    %v495 = vpop.f32.mrb[0].mxu0
    %v496 = vadd.f32 %v192, %v495
    %v497 = vpop.f32.mrb[0].mxu0
    %v498 = vadd.f32 %v192, %v497
    %v499 = vpop.f32.mrb[0].mxu0
    %v500 = vadd.f32 %v197, %v499
    %v501 = vpop.f32.mrb[0].mxu0
    %v502 = vadd.f32 %v197, %v501
    %503 = vdwg.mxu0
    %v504 = vmax.f32 %v247, 0.0
    %v505 = vmax.f32 %v249, 0.0
    %v506 = vmax.f32 %v320, 0.0
    %v507 = vmax.f32 %v322, 0.0
    %v508 = vmax.f32 %v393, 0.0
    %v509 = vmax.f32 %v395, 0.0
    %v510 = vmax.f32 %v466, 0.0
    %v511 = vmax.f32 %v468, 0.0
    %v512 = vmax.f32 %v251, 0.0
    %v513 = vmax.f32 %v253, 0.0
    %v514 = vmax.f32 %v324, 0.0
    %v515 = vmax.f32 %v326, 0.0
    %v516 = vmax.f32 %v397, 0.0
    %v517 = vmax.f32 %v399, 0.0
    %v518 = vmax.f32 %v470, 0.0
    %v519 = vmax.f32 %v472, 0.0
    %v520 = vmax.f32 %v257, 0.0
    %v521 = vmax.f32 %v259, 0.0
    %v522 = vmax.f32 %v330, 0.0
    %v523 = vmax.f32 %v332, 0.0
    %v524 = vmax.f32 %v403, 0.0
    %v525 = vmax.f32 %v405, 0.0
    %v526 = vmax.f32 %v476, 0.0
    %v527 = vmax.f32 %v478, 0.0
    %v528 = vmax.f32 %v261, 0.0
    %v529 = vmax.f32 %v263, 0.0
    %v530 = vmax.f32 %v334, 0.0
    %v531 = vmax.f32 %v336, 0.0
    %v532 = vmax.f32 %v407, 0.0
    %v533 = vmax.f32 %v409, 0.0
    %v534 = vmax.f32 %v480, 0.0
    %v535 = vmax.f32 %v482, 0.0
    %v536 = vmax.f32 %v267, 0.0
    %v537 = vmax.f32 %v269, 0.0
    %v538 = vmax.f32 %v340, 0.0
    %v539 = vmax.f32 %v342, 0.0
    %v540 = vmax.f32 %v413, 0.0
    %v541 = vmax.f32 %v415, 0.0
    %v542 = vmax.f32 %v486, 0.0
    %v543 = vmax.f32 %v488, 0.0
    %v544 = vmax.f32 %v271, 0.0
    %v545 = vmax.f32 %v273, 0.0
    %v546 = vmax.f32 %v344, 0.0
    %v547 = vmax.f32 %v346, 0.0
    %v548 = vmax.f32 %v417, 0.0
    %v549 = vmax.f32 %v419, 0.0
    %v550 = vmax.f32 %v490, 0.0
    %v551 = vmax.f32 %v492, 0.0
    %v552 = vmax.f32 %v277, 0.0
    %v553 = vmax.f32 %v279, 0.0
    %v554 = vmax.f32 %v350, 0.0
    %v555 = vmax.f32 %v352, 0.0
    %v556 = vmax.f32 %v423, 0.0
    %v557 = vmax.f32 %v425, 0.0
    %v558 = vmax.f32 %v496, 0.0
    %v559 = vmax.f32 %v498, 0.0
    %v560 = vmax.f32 %v281, 0.0
    %v561 = vmax.f32 %v283, 0.0
    %v562 = vmax.f32 %v354, 0.0
    %v563 = vmax.f32 %v356, 0.0
    %v564 = vmax.f32 %v427, 0.0
    %v565 = vmax.f32 %v429, 0.0
    %v566 = vmax.f32 %v500, 0.0
    %v567 = vmax.f32 %v502, 0.0
    %v568 = vpack.c.bf16 %v512, %v504
    %v569 = vpack.c.bf16 %v513, %v505
    %v570 = vpack.c.bf16 %v514, %v506
    %v571 = vpack.c.bf16 %v515, %v507
    %v572 = vpack.c.bf16 %v516, %v508
    %v573 = vpack.c.bf16 %v517, %v509
    %v574 = vpack.c.bf16 %v518, %v510
    %v575 = vpack.c.bf16 %v519, %v511
    %v576 = vpack.c.bf16 %v528, %v520
    %v577 = vpack.c.bf16 %v529, %v521
    %v578 = vpack.c.bf16 %v530, %v522
    %v579 = vpack.c.bf16 %v531, %v523
    %v580 = vpack.c.bf16 %v532, %v524
    %v581 = vpack.c.bf16 %v533, %v525
    %v582 = vpack.c.bf16 %v534, %v526
    %v583 = vpack.c.bf16 %v535, %v527
    %v584 = vpack.c.bf16 %v544, %v536
    %v585 = vpack.c.bf16 %v545, %v537
    %v586 = vpack.c.bf16 %v546, %v538
    %v587 = vpack.c.bf16 %v547, %v539
    %v588 = vpack.c.bf16 %v548, %v540
    %v589 = vpack.c.bf16 %v549, %v541
    %v590 = vpack.c.bf16 %v550, %v542
    %v591 = vpack.c.bf16 %v551, %v543
    %v592 = vpack.c.bf16 %v560, %v552
    %v593 = vpack.c.bf16 %v561, %v553
    %v594 = vpack.c.bf16 %v562, %v554
    %v595 = vpack.c.bf16 %v563, %v555
    %v596 = vpack.c.bf16 %v564, %v556
    %v597 = vpack.c.bf16 %v565, %v557
    %v598 = vpack.c.bf16 %v566, %v558
    %v599 = vpack.c.bf16 %v567, %v559
    %601 = vset.pattern.permute.xlu0 0
    %602 = vperm.xlu0 %601, %v123
    %v603 = vpop.permute.xlu0 %602
    %606 = vset.pattern.permute.xlu0 0
    %607 = vperm.xlu0 %606, %v124
    %v608 = vpop.permute.xlu0 %607
    %611 = vset.pattern.permute.xlu0 0
    %612 = vperm.xlu0 %611, %v125
    %v613 = vpop.permute.xlu0 %612
    %616 = vset.pattern.permute.xlu0 0
    %617 = vperm.xlu0 %616, %v126
    %v618 = vpop.permute.xlu0 %617
    %vm620 = vcmask 523264
    %v622 = vsel %vm620, %v89, 0
    %v625 = vsel %vm620, %v90, 0
    %627 = vmatprep.subr.bf16.mxu0 %v569
    %628 = vmatpush1.bf16.msra.mxu0 %v568
    %629 = vmatprep.subr.bf16.mxu0 %v577
    %630 = vmatpush1.bf16.msra.mxu0 %v576
    %631 = vmatprep.subr.bf16.mxu0 %v585
    %632 = vmatpush1.bf16.msra.mxu0 %v584
    %633 = vmatprep.subr.bf16.mxu0 %v593
    %634 = vmatpush1.bf16.msra.mxu0 %v592
    %635 = vmatprep.subr.bf16.mxu0 0
    %636 = vmatpush1.bf16.msra.mxu0 0
    %637 = vmatprep.subr.bf16.mxu0 0
    %638 = vmatpush1.bf16.msra.mxu0 0
    %639 = vmatprep.subr.bf16.mxu0 0
    %640 = vmatpush1.bf16.msra.mxu0 0
    %641 = vmatprep.subr.bf16.mxu0 0
    %642 = vmatpush1.bf16.msra.mxu0 0
    %643 = vmatprep.subr.bf16.mxu0 0
    %644 = vmatpush1.bf16.msra.mxu0 0
    %645 = vmatprep.subr.bf16.mxu0 0
    %646 = vmatpush1.bf16.msra.mxu0 0
    %647 = vmatprep.subr.bf16.mxu0 0
    %648 = vmatpush1.bf16.msra.mxu0 0
    %649 = vmatprep.subr.bf16.mxu0 0
    %650 = vmatpush1.bf16.msra.mxu0 0
    %651 = vmatprep.subr.bf16.mxu0 0
    %652 = vmatpush1.bf16.msra.mxu0 0
    %653 = vmatprep.subr.bf16.mxu0 0
    %654 = vmatpush1.bf16.msra.mxu0 0
    %655 = vmatprep.subr.bf16.mxu0 0
    %656 = vmatpush1.bf16.msra.mxu0 0
    %657 = vmatprep.subr.bf16.mxu0 0
    %658 = vmatpush1.bf16.msra.mxu0 0
    %659 = vmatprep.mubr.bf16.mxu0 0
    %660 = vmatmul.mubr.bf16.gmra.mrb[0].mxu0 %v622
    %v661 = vpop.f32.mrb[0].mxu0
    %v662 = vadd.f32 %v603, %v661
    %v663 = vpop.f32.mrb[0].mxu0
    %v664 = vadd.f32 %v603, %v663
    %v665 = vpop.f32.mrb[0].mxu0
    %v666 = vadd.f32 %v608, %v665
    %v667 = vpop.f32.mrb[0].mxu0
    %v668 = vadd.f32 %v608, %v667
    %669 = vmatprep.mubr.bf16.mxu0 0
    %670 = vmatmul.mubr.bf16.gmra.mrb[0].mxu0 %v625
    %v671 = vpop.f32.mrb[0].mxu0
    %v672 = vadd.f32 %v613, %v671
    %v673 = vpop.f32.mrb[0].mxu0
    %v674 = vadd.f32 %v613, %v673
    %v675 = vpop.f32.mrb[0].mxu0
    %v676 = vadd.f32 %v618, %v675
    %v677 = vpop.f32.mrb[0].mxu0
    %v678 = vadd.f32 %v618, %v677
    %679 = vdwg.mxu0
    %680 = vmatprep.subr.bf16.mxu0 %v571
    %681 = vmatpush1.bf16.msra.mxu0 %v570
    %682 = vmatprep.subr.bf16.mxu0 %v579
    %683 = vmatpush1.bf16.msra.mxu0 %v578
    %684 = vmatprep.subr.bf16.mxu0 %v587
    %685 = vmatpush1.bf16.msra.mxu0 %v586
    %686 = vmatprep.subr.bf16.mxu0 %v595
    %687 = vmatpush1.bf16.msra.mxu0 %v594
    %688 = vmatprep.subr.bf16.mxu0 0
    %689 = vmatpush1.bf16.msra.mxu0 0
    %690 = vmatprep.subr.bf16.mxu0 0
    %691 = vmatpush1.bf16.msra.mxu0 0
    %692 = vmatprep.subr.bf16.mxu0 0
    %693 = vmatpush1.bf16.msra.mxu0 0
    %694 = vmatprep.subr.bf16.mxu0 0
    %695 = vmatpush1.bf16.msra.mxu0 0
    %696 = vmatprep.subr.bf16.mxu0 0
    %697 = vmatpush1.bf16.msra.mxu0 0
    %698 = vmatprep.subr.bf16.mxu0 0
    %699 = vmatpush1.bf16.msra.mxu0 0
    %700 = vmatprep.subr.bf16.mxu0 0
    %701 = vmatpush1.bf16.msra.mxu0 0
    %702 = vmatprep.subr.bf16.mxu0 0
    %703 = vmatpush1.bf16.msra.mxu0 0
    %704 = vmatprep.subr.bf16.mxu0 0
    %705 = vmatpush1.bf16.msra.mxu0 0
    %706 = vmatprep.subr.bf16.mxu0 0
    %707 = vmatpush1.bf16.msra.mxu0 0
    %708 = vmatprep.subr.bf16.mxu0 0
    %709 = vmatpush1.bf16.msra.mxu0 0
    %710 = vmatprep.subr.bf16.mxu0 0
    %711 = vmatpush1.bf16.msra.mxu0 0
    %712 = vmatprep.mubr.bf16.mxu0 0
    %713 = vmatmul.mubr.bf16.gmra.mrb[0].mxu0 %v622
    %v714 = vpop.f32.mrb[0].mxu0
    %v715 = vadd.f32 %v603, %v714
    %v716 = vpop.f32.mrb[0].mxu0
    %v717 = vadd.f32 %v603, %v716
    %v718 = vpop.f32.mrb[0].mxu0
    %v719 = vadd.f32 %v608, %v718
    %v720 = vpop.f32.mrb[0].mxu0
    %v721 = vadd.f32 %v608, %v720
    %722 = vmatprep.mubr.bf16.mxu0 0
    %723 = vmatmul.mubr.bf16.gmra.mrb[0].mxu0 %v625
    %v724 = vpop.f32.mrb[0].mxu0
    %v725 = vadd.f32 %v613, %v724
    %v726 = vpop.f32.mrb[0].mxu0
    %v727 = vadd.f32 %v613, %v726
    %v728 = vpop.f32.mrb[0].mxu0
    %v729 = vadd.f32 %v618, %v728
    %v730 = vpop.f32.mrb[0].mxu0
    %v731 = vadd.f32 %v618, %v730
    %732 = vdwg.mxu0
    %733 = vmatprep.subr.bf16.mxu0 %v573
    %734 = vmatpush1.bf16.msra.mxu0 %v572
    %735 = vmatprep.subr.bf16.mxu0 %v581
    %736 = vmatpush1.bf16.msra.mxu0 %v580
    %737 = vmatprep.subr.bf16.mxu0 %v589
    %738 = vmatpush1.bf16.msra.mxu0 %v588
    %739 = vmatprep.subr.bf16.mxu0 %v597
    %740 = vmatpush1.bf16.msra.mxu0 %v596
    %741 = vmatprep.subr.bf16.mxu0 0
    %742 = vmatpush1.bf16.msra.mxu0 0
    %743 = vmatprep.subr.bf16.mxu0 0
    %744 = vmatpush1.bf16.msra.mxu0 0
    %745 = vmatprep.subr.bf16.mxu0 0
    %746 = vmatpush1.bf16.msra.mxu0 0
    %747 = vmatprep.subr.bf16.mxu0 0
    %748 = vmatpush1.bf16.msra.mxu0 0
    %749 = vmatprep.subr.bf16.mxu0 0
    %750 = vmatpush1.bf16.msra.mxu0 0
    %751 = vmatprep.subr.bf16.mxu0 0
    %752 = vmatpush1.bf16.msra.mxu0 0
    %753 = vmatprep.subr.bf16.mxu0 0
    %754 = vmatpush1.bf16.msra.mxu0 0
    %755 = vmatprep.subr.bf16.mxu0 0
    %756 = vmatpush1.bf16.msra.mxu0 0
    %757 = vmatprep.subr.bf16.mxu0 0
    %758 = vmatpush1.bf16.msra.mxu0 0
    %759 = vmatprep.subr.bf16.mxu0 0
    %760 = vmatpush1.bf16.msra.mxu0 0
    %761 = vmatprep.subr.bf16.mxu0 0
    %762 = vmatpush1.bf16.msra.mxu0 0
    %763 = vmatprep.subr.bf16.mxu0 0
    %764 = vmatpush1.bf16.msra.mxu0 0
    %765 = vmatprep.mubr.bf16.mxu0 0
    %766 = vmatmul.mubr.bf16.gmra.mrb[0].mxu0 %v622
    %v767 = vpop.f32.mrb[0].mxu0
    %v768 = vadd.f32 %v603, %v767
    %v769 = vpop.f32.mrb[0].mxu0
    %v770 = vadd.f32 %v603, %v769
    %v771 = vpop.f32.mrb[0].mxu0
    %v772 = vadd.f32 %v608, %v771
    %v773 = vpop.f32.mrb[0].mxu0
    %v774 = vadd.f32 %v608, %v773
    %775 = vmatprep.mubr.bf16.mxu0 0
    %776 = vmatmul.mubr.bf16.gmra.mrb[0].mxu0 %v625
    %v777 = vpop.f32.mrb[0].mxu0
    %v778 = vadd.f32 %v613, %v777
    %v779 = vpop.f32.mrb[0].mxu0
    %v780 = vadd.f32 %v613, %v779
    %v781 = vpop.f32.mrb[0].mxu0
    %v782 = vadd.f32 %v618, %v781
    %v783 = vpop.f32.mrb[0].mxu0
    %v784 = vadd.f32 %v618, %v783
    %785 = vdwg.mxu0
    %786 = vmatprep.subr.bf16.mxu0 %v575
    %787 = vmatpush1.bf16.msra.mxu0 %v574
    %788 = vmatprep.subr.bf16.mxu0 %v583
    %789 = vmatpush1.bf16.msra.mxu0 %v582
    %790 = vmatprep.subr.bf16.mxu0 %v591
    %791 = vmatpush1.bf16.msra.mxu0 %v590
    %792 = vmatprep.subr.bf16.mxu0 %v599
    %793 = vmatpush1.bf16.msra.mxu0 %v598
    %794 = vmatprep.subr.bf16.mxu0 0
    %795 = vmatpush1.bf16.msra.mxu0 0
    %796 = vmatprep.subr.bf16.mxu0 0
    %797 = vmatpush1.bf16.msra.mxu0 0
    %798 = vmatprep.subr.bf16.mxu0 0
    %799 = vmatpush1.bf16.msra.mxu0 0
    %800 = vmatprep.subr.bf16.mxu0 0
    %801 = vmatpush1.bf16.msra.mxu0 0
    %802 = vmatprep.subr.bf16.mxu0 0
    %803 = vmatpush1.bf16.msra.mxu0 0
    %804 = vmatprep.subr.bf16.mxu0 0
    %805 = vmatpush1.bf16.msra.mxu0 0
    %806 = vmatprep.subr.bf16.mxu0 0
    %807 = vmatpush1.bf16.msra.mxu0 0
    %808 = vmatprep.subr.bf16.mxu0 0
    %809 = vmatpush1.bf16.msra.mxu0 0
    %810 = vmatprep.subr.bf16.mxu0 0
    %811 = vmatpush1.bf16.msra.mxu0 0
    %812 = vmatprep.subr.bf16.mxu0 0
    %813 = vmatpush1.bf16.msra.mxu0 0
    %814 = vmatprep.subr.bf16.mxu0 0
    %815 = vmatpush1.bf16.msra.mxu0 0
    %816 = vmatprep.subr.bf16.mxu0 0
    %817 = vmatpush1.bf16.msra.mxu0 0
    %818 = vmatprep.mubr.bf16.mxu0 0
    %819 = vmatmul.mubr.bf16.gmra.mrb[0].mxu0 %v622
    %v820 = vpop.f32.mrb[0].mxu0
    %v821 = vadd.f32 %v603, %v820
    %v822 = vpop.f32.mrb[0].mxu0
    %v823 = vadd.f32 %v603, %v822
    %v824 = vpop.f32.mrb[0].mxu0
    %v825 = vadd.f32 %v608, %v824
    %v826 = vpop.f32.mrb[0].mxu0
    %v827 = vadd.f32 %v608, %v826
    %828 = vmatprep.mubr.bf16.mxu0 0
    %829 = vmatmul.mubr.bf16.gmra.mrb[0].mxu0 %v625
    %v830 = vpop.f32.mrb[0].mxu0
    %v831 = vadd.f32 %v613, %v830
    %v832 = vpop.f32.mrb[0].mxu0
    %v833 = vadd.f32 %v613, %v832
    %v834 = vpop.f32.mrb[0].mxu0
    %v835 = vadd.f32 %v618, %v834
    %v836 = vpop.f32.mrb[0].mxu0
    %v837 = vadd.f32 %v618, %v836
    %838 = vdwg.mxu0
    %v839 = vmax.f32 %v662, 0.0
    %v840 = vmax.f32 %v664, 0.0
    %v841 = vmax.f32 %v715, 0.0
    %v842 = vmax.f32 %v717, 0.0
    %v843 = vmax.f32 %v768, 0.0
    %v844 = vmax.f32 %v770, 0.0
    %v845 = vmax.f32 %v821, 0.0
    %v846 = vmax.f32 %v823, 0.0
    %v847 = vmax.f32 %v666, 0.0
    %v848 = vmax.f32 %v668, 0.0
    %v849 = vmax.f32 %v719, 0.0
    %v850 = vmax.f32 %v721, 0.0
    %v851 = vmax.f32 %v772, 0.0
    %v852 = vmax.f32 %v774, 0.0
    %v853 = vmax.f32 %v825, 0.0
    %v854 = vmax.f32 %v827, 0.0
    %v855 = vmax.f32 %v672, 0.0
    %v856 = vmax.f32 %v674, 0.0
    %v857 = vmax.f32 %v725, 0.0
    %v858 = vmax.f32 %v727, 0.0
    %v859 = vmax.f32 %v778, 0.0
    %v860 = vmax.f32 %v780, 0.0
    %v861 = vmax.f32 %v831, 0.0
    %v862 = vmax.f32 %v833, 0.0
    %v863 = vmax.f32 %v676, 0.0
    %v864 = vmax.f32 %v678, 0.0
    %v865 = vmax.f32 %v729, 0.0
    %v866 = vmax.f32 %v731, 0.0
    %v867 = vmax.f32 %v782, 0.0
    %v868 = vmax.f32 %v784, 0.0
    %v869 = vmax.f32 %v835, 0.0
    %v870 = vmax.f32 %v837, 0.0
    %v871 = vpack.c.bf16 %v847, %v839
    %v872 = vpack.c.bf16 %v848, %v840
    %v873 = vpack.c.bf16 %v849, %v841
    %v874 = vpack.c.bf16 %v850, %v842
    %v875 = vpack.c.bf16 %v851, %v843
    %v876 = vpack.c.bf16 %v852, %v844
    %v877 = vpack.c.bf16 %v853, %v845
    %v878 = vpack.c.bf16 %v854, %v846
    %v879 = vpack.c.bf16 %v863, %v855
    %v880 = vpack.c.bf16 %v864, %v856
    %v881 = vpack.c.bf16 %v865, %v857
    %v882 = vpack.c.bf16 %v866, %v858
    %v883 = vpack.c.bf16 %v867, %v859
    %v884 = vpack.c.bf16 %v868, %v860
    %v885 = vpack.c.bf16 %v869, %v861
    %v886 = vpack.c.bf16 %v870, %v862
    %888 = vset.pattern.permute.xlu0 0
    %889 = vperm.xlu0 %888, %v127
    %v890 = vpop.permute.xlu0 %889
    %893 = vset.pattern.permute.xlu0 0
    %894 = vperm.xlu0 %893, %v128
    %v895 = vpop.permute.xlu0 %894
    %898 = vset.pattern.permute.xlu0 0
    %899 = vperm.xlu0 %898, %v129
    %v900 = vpop.permute.xlu0 %899
    %903 = vset.pattern.permute.xlu0 0
    %904 = vperm.xlu0 %903, %v130
    %v905 = vpop.permute.xlu0 %904
    %v908 = vsel %vm199, %v95, 0
    %v911 = vsel %vm199, %v96, 0
    %913 = vmatprep.subr.bf16.mxu0 %v872
    %914 = vmatpush1.bf16.msra.mxu0 %v871
    %915 = vmatprep.subr.bf16.mxu0 %v880
    %916 = vmatpush1.bf16.msra.mxu0 %v879
    %917 = vmatprep.subr.bf16.mxu0 0
    %918 = vmatpush1.bf16.msra.mxu0 0
    %919 = vmatprep.subr.bf16.mxu0 0
    %920 = vmatpush1.bf16.msra.mxu0 0
    %921 = vmatprep.subr.bf16.mxu0 0
    %922 = vmatpush1.bf16.msra.mxu0 0
    %923 = vmatprep.subr.bf16.mxu0 0
    %924 = vmatpush1.bf16.msra.mxu0 0
    %925 = vmatprep.subr.bf16.mxu0 0
    %926 = vmatpush1.bf16.msra.mxu0 0
    %927 = vmatprep.subr.bf16.mxu0 0
    %928 = vmatpush1.bf16.msra.mxu0 0
    %929 = vmatprep.subr.bf16.mxu0 0
    %930 = vmatpush1.bf16.msra.mxu0 0
    %931 = vmatprep.subr.bf16.mxu0 0
    %932 = vmatpush1.bf16.msra.mxu0 0
    %933 = vmatprep.subr.bf16.mxu0 0
    %934 = vmatpush1.bf16.msra.mxu0 0
    %935 = vmatprep.subr.bf16.mxu0 0
    %936 = vmatpush1.bf16.msra.mxu0 0
    %937 = vmatprep.subr.bf16.mxu0 0
    %938 = vmatpush1.bf16.msra.mxu0 0
    %939 = vmatprep.subr.bf16.mxu0 0
    %940 = vmatpush1.bf16.msra.mxu0 0
    %941 = vmatprep.subr.bf16.mxu0 0
    %942 = vmatpush1.bf16.msra.mxu0 0
    %943 = vmatprep.subr.bf16.mxu0 0
    %944 = vmatpush1.bf16.msra.mxu0 0
    %945 = vmatprep.mubr.bf16.mxu0 0
    %946 = vmatmul.mubr.bf16.gmra.mrb[0].mxu0 %v908
    %v947 = vpop.f32.mrb[0].mxu0
    %v948 = vadd.f32 %v890, %v947
    %v949 = vpop.f32.mrb[0].mxu0
    %v950 = vadd.f32 %v890, %v949
    %v951 = vpop.f32.mrb[0].mxu0
    %v952 = vadd.f32 %v895, %v951
    %v953 = vpop.f32.mrb[0].mxu0
    %v954 = vadd.f32 %v895, %v953
    %955 = vmatprep.mubr.bf16.mxu0 0
    %956 = vmatmul.mubr.bf16.gmra.mrb[0].mxu0 %v911
    %v957 = vpop.f32.mrb[0].mxu0
    %v958 = vadd.f32 %v900, %v957
    %v959 = vpop.f32.mrb[0].mxu0
    %v960 = vadd.f32 %v900, %v959
    %v961 = vpop.f32.mrb[0].mxu0
    %v962 = vadd.f32 %v905, %v961
    %v963 = vpop.f32.mrb[0].mxu0
    %v964 = vadd.f32 %v905, %v963
    %965 = vdwg.mxu0
    %966 = vmatprep.subr.bf16.mxu0 %v874
    %967 = vmatpush1.bf16.msra.mxu0 %v873
    %968 = vmatprep.subr.bf16.mxu0 %v882
    %969 = vmatpush1.bf16.msra.mxu0 %v881
    %970 = vmatprep.subr.bf16.mxu0 0
    %971 = vmatpush1.bf16.msra.mxu0 0
    %972 = vmatprep.subr.bf16.mxu0 0
    %973 = vmatpush1.bf16.msra.mxu0 0
    %974 = vmatprep.subr.bf16.mxu0 0
    %975 = vmatpush1.bf16.msra.mxu0 0
    %976 = vmatprep.subr.bf16.mxu0 0
    %977 = vmatpush1.bf16.msra.mxu0 0
    %978 = vmatprep.subr.bf16.mxu0 0
    %979 = vmatpush1.bf16.msra.mxu0 0
    %980 = vmatprep.subr.bf16.mxu0 0
    %981 = vmatpush1.bf16.msra.mxu0 0
    %982 = vmatprep.subr.bf16.mxu0 0
    %983 = vmatpush1.bf16.msra.mxu0 0
    %984 = vmatprep.subr.bf16.mxu0 0
    %985 = vmatpush1.bf16.msra.mxu0 0
    %986 = vmatprep.subr.bf16.mxu0 0
    %987 = vmatpush1.bf16.msra.mxu0 0
    %988 = vmatprep.subr.bf16.mxu0 0
    %989 = vmatpush1.bf16.msra.mxu0 0
    %990 = vmatprep.subr.bf16.mxu0 0
    %991 = vmatpush1.bf16.msra.mxu0 0
    %992 = vmatprep.subr.bf16.mxu0 0
    %993 = vmatpush1.bf16.msra.mxu0 0
    %994 = vmatprep.subr.bf16.mxu0 0
    %995 = vmatpush1.bf16.msra.mxu0 0
    %996 = vmatprep.subr.bf16.mxu0 0
    %997 = vmatpush1.bf16.msra.mxu0 0
    %998 = vmatprep.mubr.bf16.mxu0 0
    %999 = vmatmul.mubr.bf16.gmra.mrb[0].mxu0 %v908
    %v1000 = vpop.f32.mrb[0].mxu0
    %v1001 = vadd.f32 %v890, %v1000
    %v1002 = vpop.f32.mrb[0].mxu0
    %v1003 = vadd.f32 %v890, %v1002
    %v1004 = vpop.f32.mrb[0].mxu0
    %v1005 = vadd.f32 %v895, %v1004
    %v1006 = vpop.f32.mrb[0].mxu0
    %v1007 = vadd.f32 %v895, %v1006
    %1008 = vmatprep.mubr.bf16.mxu0 0
    %1009 = vmatmul.mubr.bf16.gmra.mrb[0].mxu0 %v911
    %v1010 = vpop.f32.mrb[0].mxu0
    %v1011 = vadd.f32 %v900, %v1010
    %v1012 = vpop.f32.mrb[0].mxu0
    %v1013 = vadd.f32 %v900, %v1012
    %v1014 = vpop.f32.mrb[0].mxu0
    %v1015 = vadd.f32 %v905, %v1014
    %v1016 = vpop.f32.mrb[0].mxu0
    %v1017 = vadd.f32 %v905, %v1016
    %1018 = vdwg.mxu0
    %1019 = vmatprep.subr.bf16.mxu0 %v876
    %1020 = vmatpush1.bf16.msra.mxu0 %v875
    %1021 = vmatprep.subr.bf16.mxu0 %v884
    %1022 = vmatpush1.bf16.msra.mxu0 %v883
    %1023 = vmatprep.subr.bf16.mxu0 0
    %1024 = vmatpush1.bf16.msra.mxu0 0
    %1025 = vmatprep.subr.bf16.mxu0 0
    %1026 = vmatpush1.bf16.msra.mxu0 0
    %1027 = vmatprep.subr.bf16.mxu0 0
    %1028 = vmatpush1.bf16.msra.mxu0 0
    %1029 = vmatprep.subr.bf16.mxu0 0
    %1030 = vmatpush1.bf16.msra.mxu0 0
    %1031 = vmatprep.subr.bf16.mxu0 0
    %1032 = vmatpush1.bf16.msra.mxu0 0
    %1033 = vmatprep.subr.bf16.mxu0 0
    %1034 = vmatpush1.bf16.msra.mxu0 0
    %1035 = vmatprep.subr.bf16.mxu0 0
    %1036 = vmatpush1.bf16.msra.mxu0 0
    %1037 = vmatprep.subr.bf16.mxu0 0
    %1038 = vmatpush1.bf16.msra.mxu0 0
    %1039 = vmatprep.subr.bf16.mxu0 0
    %1040 = vmatpush1.bf16.msra.mxu0 0
    %1041 = vmatprep.subr.bf16.mxu0 0
    %1042 = vmatpush1.bf16.msra.mxu0 0
    %1043 = vmatprep.subr.bf16.mxu0 0
    %1044 = vmatpush1.bf16.msra.mxu0 0
    %1045 = vmatprep.subr.bf16.mxu0 0
    %1046 = vmatpush1.bf16.msra.mxu0 0
    %1047 = vmatprep.subr.bf16.mxu0 0
    %1048 = vmatpush1.bf16.msra.mxu0 0
    %1049 = vmatprep.subr.bf16.mxu0 0
    %1050 = vmatpush1.bf16.msra.mxu0 0
    %1051 = vmatprep.mubr.bf16.mxu0 0
    %1052 = vmatmul.mubr.bf16.gmra.mrb[0].mxu0 %v908
    %v1053 = vpop.f32.mrb[0].mxu0
    %v1054 = vadd.f32 %v890, %v1053
    %v1055 = vpop.f32.mrb[0].mxu0
    %v1056 = vadd.f32 %v890, %v1055
    %v1057 = vpop.f32.mrb[0].mxu0
    %v1058 = vadd.f32 %v895, %v1057
    %v1059 = vpop.f32.mrb[0].mxu0
    %v1060 = vadd.f32 %v895, %v1059
    %1061 = vmatprep.mubr.bf16.mxu0 0
    %1062 = vmatmul.mubr.bf16.gmra.mrb[0].mxu0 %v911
    %v1063 = vpop.f32.mrb[0].mxu0
    %v1064 = vadd.f32 %v900, %v1063
    %v1065 = vpop.f32.mrb[0].mxu0
    %v1066 = vadd.f32 %v900, %v1065
    %v1067 = vpop.f32.mrb[0].mxu0
    %v1068 = vadd.f32 %v905, %v1067
    %v1069 = vpop.f32.mrb[0].mxu0
    %v1070 = vadd.f32 %v905, %v1069
    %1071 = vdwg.mxu0
    %1072 = vmatprep.subr.bf16.mxu0 %v878
    %1073 = vmatpush1.bf16.msra.mxu0 %v877
    %1074 = vmatprep.subr.bf16.mxu0 %v886
    %1075 = vmatpush1.bf16.msra.mxu0 %v885
    %1076 = vmatprep.subr.bf16.mxu0 0
    %1077 = vmatpush1.bf16.msra.mxu0 0
    %1078 = vmatprep.subr.bf16.mxu0 0
    %1079 = vmatpush1.bf16.msra.mxu0 0
    %1080 = vmatprep.subr.bf16.mxu0 0
    %1081 = vmatpush1.bf16.msra.mxu0 0
    %1082 = vmatprep.subr.bf16.mxu0 0
    %1083 = vmatpush1.bf16.msra.mxu0 0
    %1084 = vmatprep.subr.bf16.mxu0 0
    %1085 = vmatpush1.bf16.msra.mxu0 0
    %1086 = vmatprep.subr.bf16.mxu0 0
    %1087 = vmatpush1.bf16.msra.mxu0 0
    %1088 = vmatprep.subr.bf16.mxu0 0
    %1089 = vmatpush1.bf16.msra.mxu0 0
    %1090 = vmatprep.subr.bf16.mxu0 0
    %1091 = vmatpush1.bf16.msra.mxu0 0
    %1092 = vmatprep.subr.bf16.mxu0 0
    %1093 = vmatpush1.bf16.msra.mxu0 0
    %1094 = vmatprep.subr.bf16.mxu0 0
    %1095 = vmatpush1.bf16.msra.mxu0 0
    %1096 = vmatprep.subr.bf16.mxu0 0
    %1097 = vmatpush1.bf16.msra.mxu0 0
    %1098 = vmatprep.subr.bf16.mxu0 0
    %1099 = vmatpush1.bf16.msra.mxu0 0
    %1100 = vmatprep.subr.bf16.mxu0 0
    %1101 = vmatpush1.bf16.msra.mxu0 0
    %1102 = vmatprep.subr.bf16.mxu0 0
    %1103 = vmatpush1.bf16.msra.mxu0 0
    %1104 = vmatprep.mubr.bf16.mxu0 0
    %1105 = vmatmul.mubr.bf16.gmra.mrb[0].mxu0 %v908
    %v1106 = vpop.f32.mrb[0].mxu0
    %v1107 = vadd.f32 %v890, %v1106
    %v1108 = vpop.f32.mrb[0].mxu0
    %v1109 = vadd.f32 %v890, %v1108
    %v1110 = vpop.f32.mrb[0].mxu0
    %v1111 = vadd.f32 %v895, %v1110
    %v1112 = vpop.f32.mrb[0].mxu0
    %v1113 = vadd.f32 %v895, %v1112
    %1114 = vmatprep.mubr.bf16.mxu0 0
    %1115 = vmatmul.mubr.bf16.gmra.mrb[0].mxu0 %v911
    %v1116 = vpop.f32.mrb[0].mxu0
    %v1117 = vadd.f32 %v900, %v1116
    %v1118 = vpop.f32.mrb[0].mxu0
    %v1119 = vadd.f32 %v900, %v1118
    %v1120 = vpop.f32.mrb[0].mxu0
    %v1121 = vadd.f32 %v905, %v1120
    %v1122 = vpop.f32.mrb[0].mxu0
    %v1123 = vadd.f32 %v905, %v1122
    %1124 = vdwg.mxu0
    %v1125 = vmax.f32 %v948, 0.0
    %v1126 = vmax.f32 %v950, 0.0
    %v1127 = vmax.f32 %v1001, 0.0
    %v1128 = vmax.f32 %v1003, 0.0
    %v1129 = vmax.f32 %v1054, 0.0
    %v1130 = vmax.f32 %v1056, 0.0
    %v1131 = vmax.f32 %v1107, 0.0
    %v1132 = vmax.f32 %v1109, 0.0
    %v1133 = vmax.f32 %v952, 0.0
    %v1134 = vmax.f32 %v954, 0.0
    %v1135 = vmax.f32 %v1005, 0.0
    %v1136 = vmax.f32 %v1007, 0.0
    %v1137 = vmax.f32 %v1058, 0.0
    %v1138 = vmax.f32 %v1060, 0.0
    %v1139 = vmax.f32 %v1111, 0.0
    %v1140 = vmax.f32 %v1113, 0.0
    %v1141 = vmax.f32 %v958, 0.0
    %v1142 = vmax.f32 %v960, 0.0
    %v1143 = vmax.f32 %v1011, 0.0
    %v1144 = vmax.f32 %v1013, 0.0
    %v1145 = vmax.f32 %v1064, 0.0
    %v1146 = vmax.f32 %v1066, 0.0
    %v1147 = vmax.f32 %v1117, 0.0
    %v1148 = vmax.f32 %v1119, 0.0
    %v1149 = vmax.f32 %v962, 0.0
    %v1150 = vmax.f32 %v964, 0.0
    %v1151 = vmax.f32 %v1015, 0.0
    %v1152 = vmax.f32 %v1017, 0.0
    %v1153 = vmax.f32 %v1068, 0.0
    %v1154 = vmax.f32 %v1070, 0.0
    %v1155 = vmax.f32 %v1121, 0.0
    %v1156 = vmax.f32 %v1123, 0.0
    %v1157 = vpack.c.bf16 %v1133, %v1125
    %v1158 = vpack.c.bf16 %v1134, %v1126
    %v1159 = vpack.c.bf16 %v1135, %v1127
    %v1160 = vpack.c.bf16 %v1136, %v1128
    %v1161 = vpack.c.bf16 %v1137, %v1129
    %v1162 = vpack.c.bf16 %v1138, %v1130
    %v1163 = vpack.c.bf16 %v1139, %v1131
    %v1164 = vpack.c.bf16 %v1140, %v1132
    %v1165 = vpack.c.bf16 %v1149, %v1141
    %v1166 = vpack.c.bf16 %v1150, %v1142
    %v1167 = vpack.c.bf16 %v1151, %v1143
    %v1168 = vpack.c.bf16 %v1152, %v1144
    %v1169 = vpack.c.bf16 %v1153, %v1145
    %v1170 = vpack.c.bf16 %v1154, %v1146
    %v1171 = vpack.c.bf16 %v1155, %v1147
    %v1172 = vpack.c.bf16 %v1156, %v1148
    %1174 = vset.pattern.permute.xlu0 0
    %1175 = vperm.xlu0 %1174, %v131
    %v1176 = vpop.permute.xlu0 %1175
    %1179 = vset.pattern.permute.xlu0 0
    %1180 = vperm.xlu0 %1179, %v132
    %v1181 = vpop.permute.xlu0 %1180
    %1184 = vset.pattern.permute.xlu0 0
    %1185 = vperm.xlu0 %1184, %v133
    %v1186 = vpop.permute.xlu0 %1185
    %1189 = vset.pattern.permute.xlu0 0
    %1190 = vperm.xlu0 %1189, %v134
    %v1191 = vpop.permute.xlu0 %1190
    %1194 = vset.pattern.permute.xlu0 0
    %1195 = vperm.xlu0 %1194, %v135
    %v1196 = vpop.permute.xlu0 %1195
    %1199 = vset.pattern.permute.xlu0 0
    %1200 = vperm.xlu0 %1199, %v136
    %v1201 = vpop.permute.xlu0 %1200
    %1204 = vset.pattern.permute.xlu0 0
    %1205 = vperm.xlu0 %1204, %v137
    %v1206 = vpop.permute.xlu0 %1205
    %1209 = vset.pattern.permute.xlu0 0
    %1210 = vperm.xlu0 %1209, %v138
    %v1211 = vpop.permute.xlu0 %1210
    %v1214 = vsel %vm199, %v105, 0
    %v1217 = vsel %vm199, %v106, 0
    %v1220 = vsel %vm199, %v107, 0
    %v1223 = vsel %vm199, %v108, 0
    %1225 = vmatprep.subr.bf16.mxu0 %v1158
    %1226 = vmatpush1.bf16.msra.mxu0 %v1157
    %1227 = vmatprep.subr.bf16.mxu0 %v1166
    %1228 = vmatpush1.bf16.msra.mxu0 %v1165
    %1229 = vmatprep.subr.bf16.mxu0 0
    %1230 = vmatpush1.bf16.msra.mxu0 0
    %1231 = vmatprep.subr.bf16.mxu0 0
    %1232 = vmatpush1.bf16.msra.mxu0 0
    %1233 = vmatprep.subr.bf16.mxu0 0
    %1234 = vmatpush1.bf16.msra.mxu0 0
    %1235 = vmatprep.subr.bf16.mxu0 0
    %1236 = vmatpush1.bf16.msra.mxu0 0
    %1237 = vmatprep.subr.bf16.mxu0 0
    %1238 = vmatpush1.bf16.msra.mxu0 0
    %1239 = vmatprep.subr.bf16.mxu0 0
    %1240 = vmatpush1.bf16.msra.mxu0 0
    %1241 = vmatprep.subr.bf16.mxu0 0
    %1242 = vmatpush1.bf16.msra.mxu0 0
    %1243 = vmatprep.subr.bf16.mxu0 0
    %1244 = vmatpush1.bf16.msra.mxu0 0
    %1245 = vmatprep.subr.bf16.mxu0 0
    %1246 = vmatpush1.bf16.msra.mxu0 0
    %1247 = vmatprep.subr.bf16.mxu0 0
    %1248 = vmatpush1.bf16.msra.mxu0 0
    %1249 = vmatprep.subr.bf16.mxu0 0
    %1250 = vmatpush1.bf16.msra.mxu0 0
    %1251 = vmatprep.subr.bf16.mxu0 0
    %1252 = vmatpush1.bf16.msra.mxu0 0
    %1253 = vmatprep.subr.bf16.mxu0 0
    %1254 = vmatpush1.bf16.msra.mxu0 0
    %1255 = vmatprep.subr.bf16.mxu0 0
    %1256 = vmatpush1.bf16.msra.mxu0 0
    %1257 = vmatprep.mubr.bf16.mxu0 0
    %1258 = vmatmul.mubr.bf16.gmra.mrb[0].mxu0 %v1214
    %v1259 = vpop.f32.mrb[0].mxu0
    %v1260 = vadd.f32 %v1176, %v1259
    %v1261 = vpop.f32.mrb[0].mxu0
    %v1262 = vadd.f32 %v1176, %v1261
    %v1263 = vpop.f32.mrb[0].mxu0
    %v1264 = vadd.f32 %v1181, %v1263
    %v1265 = vpop.f32.mrb[0].mxu0
    %v1266 = vadd.f32 %v1181, %v1265
    %1267 = vmatprep.mubr.bf16.mxu0 0
    %1268 = vmatmul.mubr.bf16.gmra.mrb[0].mxu0 %v1217
    %v1269 = vpop.f32.mrb[0].mxu0
    %v1270 = vadd.f32 %v1186, %v1269
    %v1271 = vpop.f32.mrb[0].mxu0
    %v1272 = vadd.f32 %v1186, %v1271
    %v1273 = vpop.f32.mrb[0].mxu0
    %v1274 = vadd.f32 %v1191, %v1273
    %v1275 = vpop.f32.mrb[0].mxu0
    %v1276 = vadd.f32 %v1191, %v1275
    %1277 = vmatprep.mubr.bf16.mxu0 0
    %1278 = vmatmul.mubr.bf16.gmra.mrb[0].mxu0 %v1220
    %v1279 = vpop.f32.mrb[0].mxu0
    %v1280 = vadd.f32 %v1196, %v1279
    %v1281 = vpop.f32.mrb[0].mxu0
    %v1282 = vadd.f32 %v1196, %v1281
    %v1283 = vpop.f32.mrb[0].mxu0
    %v1284 = vadd.f32 %v1201, %v1283
    %v1285 = vpop.f32.mrb[0].mxu0
    %v1286 = vadd.f32 %v1201, %v1285
    %1287 = vmatprep.mubr.bf16.mxu0 0
    %1288 = vmatmul.mubr.bf16.gmra.mrb[0].mxu0 %v1223
    %v1289 = vpop.f32.mrb[0].mxu0
    %v1290 = vadd.f32 %v1206, %v1289
    %v1291 = vpop.f32.mrb[0].mxu0
    %v1292 = vadd.f32 %v1206, %v1291
    %v1293 = vpop.f32.mrb[0].mxu0
    %v1294 = vadd.f32 %v1211, %v1293
    %v1295 = vpop.f32.mrb[0].mxu0
    %v1296 = vadd.f32 %v1211, %v1295
    %1297 = vdwg.mxu0
    %1298 = vmatprep.subr.bf16.mxu0 %v1160
    %1299 = vmatpush1.bf16.msra.mxu0 %v1159
    %1300 = vmatprep.subr.bf16.mxu0 %v1168
    %1301 = vmatpush1.bf16.msra.mxu0 %v1167
    %1302 = vmatprep.subr.bf16.mxu0 0
    %1303 = vmatpush1.bf16.msra.mxu0 0
    %1304 = vmatprep.subr.bf16.mxu0 0
    %1305 = vmatpush1.bf16.msra.mxu0 0
    %1306 = vmatprep.subr.bf16.mxu0 0
    %1307 = vmatpush1.bf16.msra.mxu0 0
    %1308 = vmatprep.subr.bf16.mxu0 0
    %1309 = vmatpush1.bf16.msra.mxu0 0
    %1310 = vmatprep.subr.bf16.mxu0 0
    %1311 = vmatpush1.bf16.msra.mxu0 0
    %1312 = vmatprep.subr.bf16.mxu0 0
    %1313 = vmatpush1.bf16.msra.mxu0 0
    %1314 = vmatprep.subr.bf16.mxu0 0
    %1315 = vmatpush1.bf16.msra.mxu0 0
    %1316 = vmatprep.subr.bf16.mxu0 0
    %1317 = vmatpush1.bf16.msra.mxu0 0
    %1318 = vmatprep.subr.bf16.mxu0 0
    %1319 = vmatpush1.bf16.msra.mxu0 0
    %1320 = vmatprep.subr.bf16.mxu0 0
    %1321 = vmatpush1.bf16.msra.mxu0 0
    %1322 = vmatprep.subr.bf16.mxu0 0
    %1323 = vmatpush1.bf16.msra.mxu0 0
    %1324 = vmatprep.subr.bf16.mxu0 0
    %1325 = vmatpush1.bf16.msra.mxu0 0
    %1326 = vmatprep.subr.bf16.mxu0 0
    %1327 = vmatpush1.bf16.msra.mxu0 0
    %1328 = vmatprep.subr.bf16.mxu0 0
    %1329 = vmatpush1.bf16.msra.mxu0 0
    %1330 = vmatprep.mubr.bf16.mxu0 0
    %1331 = vmatmul.mubr.bf16.gmra.mrb[0].mxu0 %v1214
    %v1332 = vpop.f32.mrb[0].mxu0
    %v1333 = vadd.f32 %v1176, %v1332
    %v1334 = vpop.f32.mrb[0].mxu0
    %v1335 = vadd.f32 %v1176, %v1334
    %v1336 = vpop.f32.mrb[0].mxu0
    %v1337 = vadd.f32 %v1181, %v1336
    %v1338 = vpop.f32.mrb[0].mxu0
    %v1339 = vadd.f32 %v1181, %v1338
    %1340 = vmatprep.mubr.bf16.mxu0 0
    %1341 = vmatmul.mubr.bf16.gmra.mrb[0].mxu0 %v1217
    %v1342 = vpop.f32.mrb[0].mxu0
    %v1343 = vadd.f32 %v1186, %v1342
    %v1344 = vpop.f32.mrb[0].mxu0
    %v1345 = vadd.f32 %v1186, %v1344
    %v1346 = vpop.f32.mrb[0].mxu0
    %v1347 = vadd.f32 %v1191, %v1346
    %v1348 = vpop.f32.mrb[0].mxu0
    %v1349 = vadd.f32 %v1191, %v1348
    %1350 = vmatprep.mubr.bf16.mxu0 0
    %1351 = vmatmul.mubr.bf16.gmra.mrb[0].mxu0 %v1220
    %v1352 = vpop.f32.mrb[0].mxu0
    %v1353 = vadd.f32 %v1196, %v1352
    %v1354 = vpop.f32.mrb[0].mxu0
    %v1355 = vadd.f32 %v1196, %v1354
    %v1356 = vpop.f32.mrb[0].mxu0
    %v1357 = vadd.f32 %v1201, %v1356
    %v1358 = vpop.f32.mrb[0].mxu0
    %v1359 = vadd.f32 %v1201, %v1358
    %1360 = vmatprep.mubr.bf16.mxu0 0
    %1361 = vmatmul.mubr.bf16.gmra.mrb[0].mxu0 %v1223
    %v1362 = vpop.f32.mrb[0].mxu0
    %v1363 = vadd.f32 %v1206, %v1362
    %v1364 = vpop.f32.mrb[0].mxu0
    %v1365 = vadd.f32 %v1206, %v1364
    %v1366 = vpop.f32.mrb[0].mxu0
    %v1367 = vadd.f32 %v1211, %v1366
    %v1368 = vpop.f32.mrb[0].mxu0
    %v1369 = vadd.f32 %v1211, %v1368
    %1370 = vdwg.mxu0
    %1371 = vmatprep.subr.bf16.mxu0 %v1162
    %1372 = vmatpush1.bf16.msra.mxu0 %v1161
    %1373 = vmatprep.subr.bf16.mxu0 %v1170
    %1374 = vmatpush1.bf16.msra.mxu0 %v1169
    %1375 = vmatprep.subr.bf16.mxu0 0
    %1376 = vmatpush1.bf16.msra.mxu0 0
    %1377 = vmatprep.subr.bf16.mxu0 0
    %1378 = vmatpush1.bf16.msra.mxu0 0
    %1379 = vmatprep.subr.bf16.mxu0 0
    %1380 = vmatpush1.bf16.msra.mxu0 0
    %1381 = vmatprep.subr.bf16.mxu0 0
    %1382 = vmatpush1.bf16.msra.mxu0 0
    %1383 = vmatprep.subr.bf16.mxu0 0
    %1384 = vmatpush1.bf16.msra.mxu0 0
    %1385 = vmatprep.subr.bf16.mxu0 0
    %1386 = vmatpush1.bf16.msra.mxu0 0
    %1387 = vmatprep.subr.bf16.mxu0 0
    %1388 = vmatpush1.bf16.msra.mxu0 0
    %1389 = vmatprep.subr.bf16.mxu0 0
    %1390 = vmatpush1.bf16.msra.mxu0 0
    %1391 = vmatprep.subr.bf16.mxu0 0
    %1392 = vmatpush1.bf16.msra.mxu0 0
    %1393 = vmatprep.subr.bf16.mxu0 0
    %1394 = vmatpush1.bf16.msra.mxu0 0
    %1395 = vmatprep.subr.bf16.mxu0 0
    %1396 = vmatpush1.bf16.msra.mxu0 0
    %1397 = vmatprep.subr.bf16.mxu0 0
    %1398 = vmatpush1.bf16.msra.mxu0 0
    %1399 = vmatprep.subr.bf16.mxu0 0
    %1400 = vmatpush1.bf16.msra.mxu0 0
    %1401 = vmatprep.subr.bf16.mxu0 0
    %1402 = vmatpush1.bf16.msra.mxu0 0
    %1403 = vmatprep.mubr.bf16.mxu0 0
    %1404 = vmatmul.mubr.bf16.gmra.mrb[0].mxu0 %v1214
    %v1405 = vpop.f32.mrb[0].mxu0
    %v1406 = vadd.f32 %v1176, %v1405
    %v1407 = vpop.f32.mrb[0].mxu0
    %v1408 = vadd.f32 %v1176, %v1407
    %v1409 = vpop.f32.mrb[0].mxu0
    %v1410 = vadd.f32 %v1181, %v1409
    %v1411 = vpop.f32.mrb[0].mxu0
    %v1412 = vadd.f32 %v1181, %v1411
    %1413 = vmatprep.mubr.bf16.mxu0 0
    %1414 = vmatmul.mubr.bf16.gmra.mrb[0].mxu0 %v1217
    %v1415 = vpop.f32.mrb[0].mxu0
    %v1416 = vadd.f32 %v1186, %v1415
    %v1417 = vpop.f32.mrb[0].mxu0
    %v1418 = vadd.f32 %v1186, %v1417
    %v1419 = vpop.f32.mrb[0].mxu0
    %v1420 = vadd.f32 %v1191, %v1419
    %v1421 = vpop.f32.mrb[0].mxu0
    %v1422 = vadd.f32 %v1191, %v1421
    %1423 = vmatprep.mubr.bf16.mxu0 0
    %1424 = vmatmul.mubr.bf16.gmra.mrb[0].mxu0 %v1220
    %v1425 = vpop.f32.mrb[0].mxu0
    %v1426 = vadd.f32 %v1196, %v1425
    %v1427 = vpop.f32.mrb[0].mxu0
    %v1428 = vadd.f32 %v1196, %v1427
    %v1429 = vpop.f32.mrb[0].mxu0
    %v1430 = vadd.f32 %v1201, %v1429
    %v1431 = vpop.f32.mrb[0].mxu0
    %v1432 = vadd.f32 %v1201, %v1431
    %1433 = vmatprep.mubr.bf16.mxu0 0
    %1434 = vmatmul.mubr.bf16.gmra.mrb[0].mxu0 %v1223
    %v1435 = vpop.f32.mrb[0].mxu0
    %v1436 = vadd.f32 %v1206, %v1435
    %v1437 = vpop.f32.mrb[0].mxu0
    %v1438 = vadd.f32 %v1206, %v1437
    %v1439 = vpop.f32.mrb[0].mxu0
    %v1440 = vadd.f32 %v1211, %v1439
    %v1441 = vpop.f32.mrb[0].mxu0
    %v1442 = vadd.f32 %v1211, %v1441
    %1443 = vdwg.mxu0
    %1444 = vmatprep.subr.bf16.mxu0 %v1164
    %1445 = vmatpush1.bf16.msra.mxu0 %v1163
    %1446 = vmatprep.subr.bf16.mxu0 %v1172
    %1447 = vmatpush1.bf16.msra.mxu0 %v1171
    %1448 = vmatprep.subr.bf16.mxu0 0
    %1449 = vmatpush1.bf16.msra.mxu0 0
    %1450 = vmatprep.subr.bf16.mxu0 0
    %1451 = vmatpush1.bf16.msra.mxu0 0
    %1452 = vmatprep.subr.bf16.mxu0 0
    %1453 = vmatpush1.bf16.msra.mxu0 0
    %1454 = vmatprep.subr.bf16.mxu0 0
    %1455 = vmatpush1.bf16.msra.mxu0 0
    %1456 = vmatprep.subr.bf16.mxu0 0
    %1457 = vmatpush1.bf16.msra.mxu0 0
    %1458 = vmatprep.subr.bf16.mxu0 0
    %1459 = vmatpush1.bf16.msra.mxu0 0
    %1460 = vmatprep.subr.bf16.mxu0 0
    %1461 = vmatpush1.bf16.msra.mxu0 0
    %1462 = vmatprep.subr.bf16.mxu0 0
    %1463 = vmatpush1.bf16.msra.mxu0 0
    %1464 = vmatprep.subr.bf16.mxu0 0
    %1465 = vmatpush1.bf16.msra.mxu0 0
    %1466 = vmatprep.subr.bf16.mxu0 0
    %1467 = vmatpush1.bf16.msra.mxu0 0
    %1468 = vmatprep.subr.bf16.mxu0 0
    %1469 = vmatpush1.bf16.msra.mxu0 0
    %1470 = vmatprep.subr.bf16.mxu0 0
    %1471 = vmatpush1.bf16.msra.mxu0 0
    %1472 = vmatprep.subr.bf16.mxu0 0
    %1473 = vmatpush1.bf16.msra.mxu0 0
    %1474 = vmatprep.subr.bf16.mxu0 0
    %1475 = vmatpush1.bf16.msra.mxu0 0
    %1476 = vmatprep.mubr.bf16.mxu0 0
    %1477 = vmatmul.mubr.bf16.gmra.mrb[0].mxu0 %v1214
    %v1478 = vpop.f32.mrb[0].mxu0
    %v1479 = vadd.f32 %v1176, %v1478
    %v1480 = vpop.f32.mrb[0].mxu0
    %v1481 = vadd.f32 %v1176, %v1480
    %v1482 = vpop.f32.mrb[0].mxu0
    %v1483 = vadd.f32 %v1181, %v1482
    %v1484 = vpop.f32.mrb[0].mxu0
    %v1485 = vadd.f32 %v1181, %v1484
    %1486 = vmatprep.mubr.bf16.mxu0 0
    %1487 = vmatmul.mubr.bf16.gmra.mrb[0].mxu0 %v1217
    %v1488 = vpop.f32.mrb[0].mxu0
    %v1489 = vadd.f32 %v1186, %v1488
    %v1490 = vpop.f32.mrb[0].mxu0
    %v1491 = vadd.f32 %v1186, %v1490
    %v1492 = vpop.f32.mrb[0].mxu0
    %v1493 = vadd.f32 %v1191, %v1492
    %v1494 = vpop.f32.mrb[0].mxu0
    %v1495 = vadd.f32 %v1191, %v1494
    %1496 = vmatprep.mubr.bf16.mxu0 0
    %1497 = vmatmul.mubr.bf16.gmra.mrb[0].mxu0 %v1220
    %v1498 = vpop.f32.mrb[0].mxu0
    %v1499 = vadd.f32 %v1196, %v1498
    %v1500 = vpop.f32.mrb[0].mxu0
    %v1501 = vadd.f32 %v1196, %v1500
    %v1502 = vpop.f32.mrb[0].mxu0
    %v1503 = vadd.f32 %v1201, %v1502
    %v1504 = vpop.f32.mrb[0].mxu0
    %v1505 = vadd.f32 %v1201, %v1504
    %1506 = vmatprep.mubr.bf16.mxu0 0
    %1507 = vmatmul.mubr.bf16.gmra.mrb[0].mxu0 %v1223
    %v1508 = vpop.f32.mrb[0].mxu0
    %v1509 = vadd.f32 %v1206, %v1508
    %v1510 = vpop.f32.mrb[0].mxu0
    %v1511 = vadd.f32 %v1206, %v1510
    %v1512 = vpop.f32.mrb[0].mxu0
    %v1513 = vadd.f32 %v1211, %v1512
    %v1514 = vpop.f32.mrb[0].mxu0
    %v1515 = vadd.f32 %v1211, %v1514
    %1516 = vdwg.mxu0
    %v1517 = vmax.f32 %v1260, 0.0
    %v1518 = vmax.f32 %v1262, 0.0
    %v1519 = vmax.f32 %v1333, 0.0
    %v1520 = vmax.f32 %v1335, 0.0
    %v1521 = vmax.f32 %v1406, 0.0
    %v1522 = vmax.f32 %v1408, 0.0
    %v1523 = vmax.f32 %v1479, 0.0
    %v1524 = vmax.f32 %v1481, 0.0
    %v1525 = vmax.f32 %v1264, 0.0
    %v1526 = vmax.f32 %v1266, 0.0
    %v1527 = vmax.f32 %v1337, 0.0
    %v1528 = vmax.f32 %v1339, 0.0
    %v1529 = vmax.f32 %v1410, 0.0
    %v1530 = vmax.f32 %v1412, 0.0
    %v1531 = vmax.f32 %v1483, 0.0
    %v1532 = vmax.f32 %v1485, 0.0
    %v1533 = vmax.f32 %v1270, 0.0
    %v1534 = vmax.f32 %v1272, 0.0
    %v1535 = vmax.f32 %v1343, 0.0
    %v1536 = vmax.f32 %v1345, 0.0
    %v1537 = vmax.f32 %v1416, 0.0
    %v1538 = vmax.f32 %v1418, 0.0
    %v1539 = vmax.f32 %v1489, 0.0
    %v1540 = vmax.f32 %v1491, 0.0
    %v1541 = vmax.f32 %v1274, 0.0
    %v1542 = vmax.f32 %v1276, 0.0
    %v1543 = vmax.f32 %v1347, 0.0
    %v1544 = vmax.f32 %v1349, 0.0
    %v1545 = vmax.f32 %v1420, 0.0
    %v1546 = vmax.f32 %v1422, 0.0
    %v1547 = vmax.f32 %v1493, 0.0
    %v1548 = vmax.f32 %v1495, 0.0
    %v1549 = vmax.f32 %v1280, 0.0
    %v1550 = vmax.f32 %v1282, 0.0
    %v1551 = vmax.f32 %v1353, 0.0
    %v1552 = vmax.f32 %v1355, 0.0
    %v1553 = vmax.f32 %v1426, 0.0
    %v1554 = vmax.f32 %v1428, 0.0
    %v1555 = vmax.f32 %v1499, 0.0
    %v1556 = vmax.f32 %v1501, 0.0
    %v1557 = vmax.f32 %v1284, 0.0
    %v1558 = vmax.f32 %v1286, 0.0
    %v1559 = vmax.f32 %v1357, 0.0
    %v1560 = vmax.f32 %v1359, 0.0
    %v1561 = vmax.f32 %v1430, 0.0
    %v1562 = vmax.f32 %v1432, 0.0
    %v1563 = vmax.f32 %v1503, 0.0
    %v1564 = vmax.f32 %v1505, 0.0
    %v1565 = vmax.f32 %v1290, 0.0
    %v1566 = vmax.f32 %v1292, 0.0
    %v1567 = vmax.f32 %v1363, 0.0
    %v1568 = vmax.f32 %v1365, 0.0
    %v1569 = vmax.f32 %v1436, 0.0
    %v1570 = vmax.f32 %v1438, 0.0
    %v1571 = vmax.f32 %v1509, 0.0
    %v1572 = vmax.f32 %v1511, 0.0
    %v1573 = vmax.f32 %v1294, 0.0
    %v1574 = vmax.f32 %v1296, 0.0
    %v1575 = vmax.f32 %v1367, 0.0
    %v1576 = vmax.f32 %v1369, 0.0
    %v1577 = vmax.f32 %v1440, 0.0
    %v1578 = vmax.f32 %v1442, 0.0
    %v1579 = vmax.f32 %v1513, 0.0
    %v1580 = vmax.f32 %v1515, 0.0
    %v1581 = vpack.c.bf16 %v1525, %v1517
    %v1582 = vpack.c.bf16 %v1526, %v1518
    %v1583 = vpack.c.bf16 %v1527, %v1519
    %v1584 = vpack.c.bf16 %v1528, %v1520
    %v1585 = vpack.c.bf16 %v1529, %v1521
    %v1586 = vpack.c.bf16 %v1530, %v1522
    %v1587 = vpack.c.bf16 %v1531, %v1523
    %v1588 = vpack.c.bf16 %v1532, %v1524
    %v1589 = vpack.c.bf16 %v1541, %v1533
    %v1590 = vpack.c.bf16 %v1542, %v1534
    %v1591 = vpack.c.bf16 %v1543, %v1535
    %v1592 = vpack.c.bf16 %v1544, %v1536
    %v1593 = vpack.c.bf16 %v1545, %v1537
    %v1594 = vpack.c.bf16 %v1546, %v1538
    %v1595 = vpack.c.bf16 %v1547, %v1539
    %v1596 = vpack.c.bf16 %v1548, %v1540
    %v1597 = vpack.c.bf16 %v1557, %v1549
    %v1598 = vpack.c.bf16 %v1558, %v1550
    %v1599 = vpack.c.bf16 %v1559, %v1551
    %v1600 = vpack.c.bf16 %v1560, %v1552
    %v1601 = vpack.c.bf16 %v1561, %v1553
    %v1602 = vpack.c.bf16 %v1562, %v1554
    %v1603 = vpack.c.bf16 %v1563, %v1555
    %v1604 = vpack.c.bf16 %v1564, %v1556
    %v1605 = vpack.c.bf16 %v1573, %v1565
    %v1606 = vpack.c.bf16 %v1574, %v1566
    %v1607 = vpack.c.bf16 %v1575, %v1567
    %v1608 = vpack.c.bf16 %v1576, %v1568
    %v1609 = vpack.c.bf16 %v1577, %v1569
    %v1610 = vpack.c.bf16 %v1578, %v1570
    %v1611 = vpack.c.bf16 %v1579, %v1571
    %v1612 = vpack.c.bf16 %v1580, %v1572
    %1614 = vset.pattern.permute.xlu0 0
    %1615 = vperm.xlu0 %1614, %v139
    %v1616 = vpop.permute.xlu0 %1615
    %1619 = vset.pattern.permute.xlu0 0
    %1620 = vperm.xlu0 %1619, %v140
    %v1621 = vpop.permute.xlu0 %1620
    %1624 = vset.pattern.permute.xlu0 0
    %1625 = vperm.xlu0 %1624, %v141
    %v1626 = vpop.permute.xlu0 %1625
    %1629 = vset.pattern.permute.xlu0 0
    %1630 = vperm.xlu0 %1629, %v142
    %v1631 = vpop.permute.xlu0 %1630
    %v1634 = vsel %vm620, %v113, 0
    %v1637 = vsel %vm620, %v114, 0
    %1639 = vmatprep.subr.bf16.mxu0 %v1582
    %1640 = vmatpush1.bf16.msra.mxu0 %v1581
    %1641 = vmatprep.subr.bf16.mxu0 %v1590
    %1642 = vmatpush1.bf16.msra.mxu0 %v1589
    %1643 = vmatprep.subr.bf16.mxu0 %v1598
    %1644 = vmatpush1.bf16.msra.mxu0 %v1597
    %1645 = vmatprep.subr.bf16.mxu0 %v1606
    %1646 = vmatpush1.bf16.msra.mxu0 %v1605
    %1647 = vmatprep.subr.bf16.mxu0 0
    %1648 = vmatpush1.bf16.msra.mxu0 0
    %1649 = vmatprep.subr.bf16.mxu0 0
    %1650 = vmatpush1.bf16.msra.mxu0 0
    %1651 = vmatprep.subr.bf16.mxu0 0
    %1652 = vmatpush1.bf16.msra.mxu0 0
    %1653 = vmatprep.subr.bf16.mxu0 0
    %1654 = vmatpush1.bf16.msra.mxu0 0
    %1655 = vmatprep.subr.bf16.mxu0 0
    %1656 = vmatpush1.bf16.msra.mxu0 0
    %1657 = vmatprep.subr.bf16.mxu0 0
    %1658 = vmatpush1.bf16.msra.mxu0 0
    %1659 = vmatprep.subr.bf16.mxu0 0
    %1660 = vmatpush1.bf16.msra.mxu0 0
    %1661 = vmatprep.subr.bf16.mxu0 0
    %1662 = vmatpush1.bf16.msra.mxu0 0
    %1663 = vmatprep.subr.bf16.mxu0 0
    %1664 = vmatpush1.bf16.msra.mxu0 0
    %1665 = vmatprep.subr.bf16.mxu0 0
    %1666 = vmatpush1.bf16.msra.mxu0 0
    %1667 = vmatprep.subr.bf16.mxu0 0
    %1668 = vmatpush1.bf16.msra.mxu0 0
    %1669 = vmatprep.subr.bf16.mxu0 0
    %1670 = vmatpush1.bf16.msra.mxu0 0
    %1671 = vmatprep.mubr.bf16.mxu0 0
    %1672 = vmatmul.mubr.bf16.gmra.mrb[0].mxu0 %v1634
    %v1673 = vpop.f32.mrb[0].mxu0
    %v1674 = vadd.f32 %v1616, %v1673
    %v1675 = vpop.f32.mrb[0].mxu0
    %v1676 = vadd.f32 %v1616, %v1675
    %v1677 = vpop.f32.mrb[0].mxu0
    %v1678 = vadd.f32 %v1621, %v1677
    %v1679 = vpop.f32.mrb[0].mxu0
    %v1680 = vadd.f32 %v1621, %v1679
    %1681 = vmatprep.mubr.bf16.mxu0 0
    %1682 = vmatmul.mubr.bf16.gmra.mrb[0].mxu0 %v1637
    %v1683 = vpop.f32.mrb[0].mxu0
    %v1684 = vadd.f32 %v1626, %v1683
    %v1685 = vpop.f32.mrb[0].mxu0
    %v1686 = vadd.f32 %v1626, %v1685
    %v1687 = vpop.f32.mrb[0].mxu0
    %v1688 = vadd.f32 %v1631, %v1687
    %v1689 = vpop.f32.mrb[0].mxu0
    %v1690 = vadd.f32 %v1631, %v1689
    %1691 = vdwg.mxu0
    %1692 = vmatprep.subr.bf16.mxu0 %v1584
    %1693 = vmatpush1.bf16.msra.mxu0 %v1583
    %1694 = vmatprep.subr.bf16.mxu0 %v1592
    %1695 = vmatpush1.bf16.msra.mxu0 %v1591
    %1696 = vmatprep.subr.bf16.mxu0 %v1600
    %1697 = vmatpush1.bf16.msra.mxu0 %v1599
    %1698 = vmatprep.subr.bf16.mxu0 %v1608
    %1699 = vmatpush1.bf16.msra.mxu0 %v1607
    %1700 = vmatprep.subr.bf16.mxu0 0
    %1701 = vmatpush1.bf16.msra.mxu0 0
    %1702 = vmatprep.subr.bf16.mxu0 0
    %1703 = vmatpush1.bf16.msra.mxu0 0
    %1704 = vmatprep.subr.bf16.mxu0 0
    %1705 = vmatpush1.bf16.msra.mxu0 0
    %1706 = vmatprep.subr.bf16.mxu0 0
    %1707 = vmatpush1.bf16.msra.mxu0 0
    %1708 = vmatprep.subr.bf16.mxu0 0
    %1709 = vmatpush1.bf16.msra.mxu0 0
    %1710 = vmatprep.subr.bf16.mxu0 0
    %1711 = vmatpush1.bf16.msra.mxu0 0
    %1712 = vmatprep.subr.bf16.mxu0 0
    %1713 = vmatpush1.bf16.msra.mxu0 0
    %1714 = vmatprep.subr.bf16.mxu0 0
    %1715 = vmatpush1.bf16.msra.mxu0 0
    %1716 = vmatprep.subr.bf16.mxu0 0
    %1717 = vmatpush1.bf16.msra.mxu0 0
    %1718 = vmatprep.subr.bf16.mxu0 0
    %1719 = vmatpush1.bf16.msra.mxu0 0
    %1720 = vmatprep.subr.bf16.mxu0 0
    %1721 = vmatpush1.bf16.msra.mxu0 0
    %1722 = vmatprep.subr.bf16.mxu0 0
    %1723 = vmatpush1.bf16.msra.mxu0 0
    %1724 = vmatprep.mubr.bf16.mxu0 0
    %1725 = vmatmul.mubr.bf16.gmra.mrb[0].mxu0 %v1634
    %v1726 = vpop.f32.mrb[0].mxu0
    %v1727 = vadd.f32 %v1616, %v1726
    %v1728 = vpop.f32.mrb[0].mxu0
    %v1729 = vadd.f32 %v1616, %v1728
    %v1730 = vpop.f32.mrb[0].mxu0
    %v1731 = vadd.f32 %v1621, %v1730
    %v1732 = vpop.f32.mrb[0].mxu0
    %v1733 = vadd.f32 %v1621, %v1732
    %1734 = vmatprep.mubr.bf16.mxu0 0
    %1735 = vmatmul.mubr.bf16.gmra.mrb[0].mxu0 %v1637
    %v1736 = vpop.f32.mrb[0].mxu0
    %v1737 = vadd.f32 %v1626, %v1736
    %v1738 = vpop.f32.mrb[0].mxu0
    %v1739 = vadd.f32 %v1626, %v1738
    %v1740 = vpop.f32.mrb[0].mxu0
    %v1741 = vadd.f32 %v1631, %v1740
    %v1742 = vpop.f32.mrb[0].mxu0
    %v1743 = vadd.f32 %v1631, %v1742
    %1744 = vdwg.mxu0
    %1745 = vmatprep.subr.bf16.mxu0 %v1586
    %1746 = vmatpush1.bf16.msra.mxu0 %v1585
    %1747 = vmatprep.subr.bf16.mxu0 %v1594
    %1748 = vmatpush1.bf16.msra.mxu0 %v1593
    %1749 = vmatprep.subr.bf16.mxu0 %v1602
    %1750 = vmatpush1.bf16.msra.mxu0 %v1601
    %1751 = vmatprep.subr.bf16.mxu0 %v1610
    %1752 = vmatpush1.bf16.msra.mxu0 %v1609
    %1753 = vmatprep.subr.bf16.mxu0 0
    %1754 = vmatpush1.bf16.msra.mxu0 0
    %1755 = vmatprep.subr.bf16.mxu0 0
    %1756 = vmatpush1.bf16.msra.mxu0 0
    %1757 = vmatprep.subr.bf16.mxu0 0
    %1758 = vmatpush1.bf16.msra.mxu0 0
    %1759 = vmatprep.subr.bf16.mxu0 0
    %1760 = vmatpush1.bf16.msra.mxu0 0
    %1761 = vmatprep.subr.bf16.mxu0 0
    %1762 = vmatpush1.bf16.msra.mxu0 0
    %1763 = vmatprep.subr.bf16.mxu0 0
    %1764 = vmatpush1.bf16.msra.mxu0 0
    %1765 = vmatprep.subr.bf16.mxu0 0
    %1766 = vmatpush1.bf16.msra.mxu0 0
    %1767 = vmatprep.subr.bf16.mxu0 0
    %1768 = vmatpush1.bf16.msra.mxu0 0
    %1769 = vmatprep.subr.bf16.mxu0 0
    %1770 = vmatpush1.bf16.msra.mxu0 0
    %1771 = vmatprep.subr.bf16.mxu0 0
    %1772 = vmatpush1.bf16.msra.mxu0 0
    %1773 = vmatprep.subr.bf16.mxu0 0
    %1774 = vmatpush1.bf16.msra.mxu0 0
    %1775 = vmatprep.subr.bf16.mxu0 0
    %1776 = vmatpush1.bf16.msra.mxu0 0
    %1777 = vmatprep.mubr.bf16.mxu0 0
    %1778 = vmatmul.mubr.bf16.gmra.mrb[0].mxu0 %v1634
    %v1779 = vpop.f32.mrb[0].mxu0
    %v1780 = vadd.f32 %v1616, %v1779
    %v1781 = vpop.f32.mrb[0].mxu0
    %v1782 = vadd.f32 %v1616, %v1781
    %v1783 = vpop.f32.mrb[0].mxu0
    %v1784 = vadd.f32 %v1621, %v1783
    %v1785 = vpop.f32.mrb[0].mxu0
    %v1786 = vadd.f32 %v1621, %v1785
    %1787 = vmatprep.mubr.bf16.mxu0 0
    %1788 = vmatmul.mubr.bf16.gmra.mrb[0].mxu0 %v1637
    %v1789 = vpop.f32.mrb[0].mxu0
    %v1790 = vadd.f32 %v1626, %v1789
    %v1791 = vpop.f32.mrb[0].mxu0
    %v1792 = vadd.f32 %v1626, %v1791
    %v1793 = vpop.f32.mrb[0].mxu0
    %v1794 = vadd.f32 %v1631, %v1793
    %v1795 = vpop.f32.mrb[0].mxu0
    %v1796 = vadd.f32 %v1631, %v1795
    %1797 = vdwg.mxu0
    %1798 = vmatprep.subr.bf16.mxu0 %v1588
    %1799 = vmatpush1.bf16.msra.mxu0 %v1587
    %1800 = vmatprep.subr.bf16.mxu0 %v1596
    %1801 = vmatpush1.bf16.msra.mxu0 %v1595
    %1802 = vmatprep.subr.bf16.mxu0 %v1604
    %1803 = vmatpush1.bf16.msra.mxu0 %v1603
    %1804 = vmatprep.subr.bf16.mxu0 %v1612
    %1805 = vmatpush1.bf16.msra.mxu0 %v1611
    %1806 = vmatprep.subr.bf16.mxu0 0
    %1807 = vmatpush1.bf16.msra.mxu0 0
    %1808 = vmatprep.subr.bf16.mxu0 0
    %1809 = vmatpush1.bf16.msra.mxu0 0
    %1810 = vmatprep.subr.bf16.mxu0 0
    %1811 = vmatpush1.bf16.msra.mxu0 0
    %1812 = vmatprep.subr.bf16.mxu0 0
    %1813 = vmatpush1.bf16.msra.mxu0 0
    %1814 = vmatprep.subr.bf16.mxu0 0
    %1815 = vmatpush1.bf16.msra.mxu0 0
    %1816 = vmatprep.subr.bf16.mxu0 0
    %1817 = vmatpush1.bf16.msra.mxu0 0
    %1818 = vmatprep.subr.bf16.mxu0 0
    %1819 = vmatpush1.bf16.msra.mxu0 0
    %1820 = vmatprep.subr.bf16.mxu0 0
    %1821 = vmatpush1.bf16.msra.mxu0 0
    %1822 = vmatprep.subr.bf16.mxu0 0
    %1823 = vmatpush1.bf16.msra.mxu0 0
    %1824 = vmatprep.subr.bf16.mxu0 0
    %1825 = vmatpush1.bf16.msra.mxu0 0
    %1826 = vmatprep.subr.bf16.mxu0 0
    %1827 = vmatpush1.bf16.msra.mxu0 0
    %1828 = vmatprep.subr.bf16.mxu0 0
    %1829 = vmatpush1.bf16.msra.mxu0 0
    %1830 = vmatprep.mubr.bf16.mxu0 0
    %1831 = vmatmul.mubr.bf16.gmra.mrb[0].mxu0 %v1634
    %v1832 = vpop.f32.mrb[0].mxu0
    %v1833 = vadd.f32 %v1616, %v1832
    %v1834 = vpop.f32.mrb[0].mxu0
    %v1835 = vadd.f32 %v1616, %v1834
    %v1836 = vpop.f32.mrb[0].mxu0
    %v1837 = vadd.f32 %v1621, %v1836
    %v1838 = vpop.f32.mrb[0].mxu0
    %v1839 = vadd.f32 %v1621, %v1838
    %1840 = vmatprep.mubr.bf16.mxu0 0
    %1841 = vmatmul.mubr.bf16.gmra.mrb[0].mxu0 %v1637
    %v1842 = vpop.f32.mrb[0].mxu0
    %v1843 = vadd.f32 %v1626, %v1842
    %v1844 = vpop.f32.mrb[0].mxu0
    %v1845 = vadd.f32 %v1626, %v1844
    %v1846 = vpop.f32.mrb[0].mxu0
    %v1847 = vadd.f32 %v1631, %v1846
    %v1848 = vpop.f32.mrb[0].mxu0
    %v1849 = vadd.f32 %v1631, %v1848
    %1850 = vdwg.mxu0
    %1851 = vst [vmem:[#allocation7] sm:$0xff] %v1674
    %1852 = vst [vmem:[#allocation7 + $0x8] sm:$0xff] %v1676
    %1853 = vst [vmem:[#allocation7 + $0x10] sm:$0xff] %v1727
    %1854 = vst [vmem:[#allocation7 + $0x18] sm:$0xff] %v1729
    %1855 = vst [vmem:[#allocation7 + $0x20] sm:$0xff] %v1780
    %1856 = vst [vmem:[#allocation7 + $0x28] sm:$0xff] %v1782
    %1857 = vst [vmem:[#allocation7 + $0x30] sm:$0xff] %v1833
    %1858 = vst [vmem:[#allocation7 + $0x38] sm:$0xff] %v1835
    %1859 = vst [vmem:[#allocation7 + $0x40] sm:$0xff] %v1678
    %1860 = vst [vmem:[#allocation7 + $0x48] sm:$0xff] %v1680
    %1861 = vst [vmem:[#allocation7 + $0x50] sm:$0xff] %v1731
    %1862 = vst [vmem:[#allocation7 + $0x58] sm:$0xff] %v1733
    %1863 = vst [vmem:[#allocation7 + $0x60] sm:$0xff] %v1784
    %1864 = vst [vmem:[#allocation7 + $0x68] sm:$0xff] %v1786
    %1865 = vst [vmem:[#allocation7 + $0x70] sm:$0xff] %v1837
    %1866 = vst [vmem:[#allocation7 + $0x78] sm:$0xff] %v1839
    %1867 = vst [vmem:[#allocation7 + $0x80] sm:$0xff] %v1684
    %1868 = vst [vmem:[#allocation7 + $0x88] sm:$0xff] %v1686
    %1869 = vst [vmem:[#allocation7 + $0x90] sm:$0xff] %v1737
    %1870 = vst [vmem:[#allocation7 + $0x98] sm:$0xff] %v1739
    %1871 = vst [vmem:[#allocation7 + $0xa0] sm:$0xff] %v1790
    %1872 = vst [vmem:[#allocation7 + $0xa8] sm:$0xff] %v1792
    %1873 = vst [vmem:[#allocation7 + $0xb0] sm:$0xff] %v1843
    %1874 = vst [vmem:[#allocation7 + $0xb8] sm:$0xff] %v1845
    %1875 = vst [vmem:[#allocation7 + $0xc0] sm:$0xff] %v1688
    %1876 = vst [vmem:[#allocation7 + $0xc8] sm:$0xff] %v1690
    %1877 = vst [vmem:[#allocation7 + $0xd0] sm:$0xff] %v1741
    %1878 = vst [vmem:[#allocation7 + $0xd8] sm:$0xff] %v1743
    %1879 = vst [vmem:[#allocation7 + $0xe0] sm:$0xff] %v1794
    %1880 = vst [vmem:[#allocation7 + $0xe8] sm:$0xff] %v1796
    %1881 = vst [vmem:[#allocation7 + $0xf0] sm:$0xff] %v1847
    %1882 = vst [vmem:[#allocation7 + $0xf8] sm:$0xff] %v1849
    // Predicated region
    $region18: #{tpu_custom_call.1} parent=1 // pred_check
      _
    $region19: #{tpu_custom_call.1} parent=1 // pred_check_branch
      %1884 = sbr.rel (0) target = $region21
    $region20: #{tpu_custom_call.1} parent=1 // pred_region
      %s1886 = ssub.s32 4096, 4096
      %1887 = vsyncadd [#allocation4], %s1886
      %s1888 = sshll.u32 [#allocation7], 4
      %s1889 = int_to_ptr.vmem [resolvable:$true] %s1888
      %1894 = dma.vmem_to_hbm [thread:$0]  %s1889, 4096, %s2, [#allocation4], 1024, 1024, 64
    $region21: #{tpu_custom_call.1} parent=1 // pred_fallthru
      _
    // Predicated region
    $region22: #{tpu_custom_call.1} parent=1 // pred_check
      _
    $region23: #{tpu_custom_call.1} parent=1 // pred_check_branch
      %1896 = sbr.rel (0) target = $region25
    $region24: #{tpu_custom_call.1} parent=1 // pred_region
      %1897 = dma.done [#allocation4], 4096
    $region25: #{tpu_custom_call.1} parent=1 // pred_fallthru
      _
    %1898 = vsyncpa [#allocation3], 1
    %1899 = vsyncpa [#allocation6], 1
    %1900 = vsyncpa [#allocation4], 1

</llo_original>
